<compile_context>
chip_gen: v7x
topology: tpu7x:2x2x1
jax: 0.10.0
libtpu: 0.0.40
codegen_flags: <defaults>
</compile_context>

<pallas_src>
import functools

import jax
import jax.numpy as jnp
from jax.experimental import pallas as pl
from jax.experimental.pallas import tpu as pltpu


def _round_up(x, m):
    return (x + m - 1) // m * m


# -----------------------------------------------------------------------------
# Fused kernel: 1x1 conv + BN + ReLU6 -> 3x3 depthwise (stride) + BN + ReLU6
#               -> 1x1 conv + BN, all on one image kept in VMEM.
# -----------------------------------------------------------------------------
def _fused_kernel(x_ref, w1_ref, b1_ref, w2_ref, b2_ref, w3_ref, b3_ref, o_ref,
                  *, stride, hh, wh, ho, wo):
    s = stride
    w1 = w1_ref[...]          # (Cp, Hp)   bf16, BN1 scale folded in
    b1 = b1_ref[...]          # (1, Hp)    f32
    w2 = w2_ref[...]          # (3, 3, Hp) f32,  BN2 scale folded in
    b2 = b2_ref[...]          # (1, Hp)    f32
    w3 = w3_ref[...]          # (Hp, Op)   bf16, BN3 scale folded in
    b3 = b3_ref[...]          # (1, Op)    f32

    # ---- Stage 1: pointwise expansion (MXU) + BN bias + ReLU6, per spatial
    # phase.  x_ref holds the image space-to-depth'ed by the stride:
    #   x_ref[i, j, r*wh + c, :] = x[r*s + i, c*s + j, :]
    h1 = []
    for i in range(s):
        row = []
        for j in range(s):
            xp = x_ref[i, j]                                   # (hh*wh, Cp) bf16
            z = jnp.dot(xp, w1, preferred_element_type=jnp.float32)
            z = jnp.clip(z + b1, 0.0, 6.0)                     # f32
            row.append(z.reshape(hh, wh, z.shape[-1]))
        h1.append(row)

    # ---- Stage 2 + 3: depthwise 3x3 (stride folded into the phase layout, so
    # only unit-stride slices are needed) + BN bias + ReLU6, then pointwise
    # projection + BN bias, one output row at a time (lane-dense stores).
    for r in range(ho):
        acc = jnp.zeros((wo, h1[0][0].shape[-1]), jnp.float32)
        for kh in range(3):
            a, pi = kh // s, kh % s
            for kw in range(3):
                b, pj = kw // s, kw % s
                patch = h1[pi][pj][r + a, b:b + wo, :]         # (wo, Hp) f32
                acc = acc + patch * w2[kh, kw:kw + 1, :]       # VPU FMA
        h2 = jnp.clip(acc + b2, 0.0, 6.0).astype(w3.dtype)     # (wo, Hp) bf16
        y = jnp.dot(h2, w3, preferred_element_type=jnp.float32) + b3
        o_ref[r] = y.astype(o_ref.dtype)


# -----------------------------------------------------------------------------
# Module wrapper with deterministic parameter init (BN folded, eval mode).
# -----------------------------------------------------------------------------
class InvertedResidualPallas:
    def __init__(self, inp, oup, stride, expand_ratio, key):
        assert stride in (1, 2)
        self.inp, self.oup, self.stride = inp, oup, stride
        self.use_res_connect = stride == 1 and inp == oup
        hidden = inp * expand_ratio
        self.hidden = hidden
        ks = jax.random.split(key, 15)
        eps = 1e-5

        def bn_fold(kg, kb, km, kv, c):
            gamma = 1.0 + 0.1 * jax.random.normal(kg, (c,), jnp.float32)
            beta = 0.1 * jax.random.normal(kb, (c,), jnp.float32)
            mean = 0.1 * jax.random.normal(km, (c,), jnp.float32)
            var = 1.0 + 0.1 * jnp.abs(jax.random.normal(kv, (c,), jnp.float32))
            scale = gamma / jnp.sqrt(var + eps)
            bias = beta - mean * scale
            return scale, bias

        # conv1: PyTorch (hidden, inp, 1, 1) -> matmul weight (inp, hidden)
        w1 = 0.1 * jax.random.normal(ks[0], (inp, hidden), jnp.float32)
        s1, b1 = bn_fold(ks[1], ks[2], ks[3], ks[4], hidden)
        # depthwise: PyTorch (hidden, 1, 3, 3) -> (3, 3, hidden)
        w2 = 0.1 * jax.random.normal(ks[5], (3, 3, hidden), jnp.float32)
        s2, b2 = bn_fold(ks[6], ks[7], ks[8], ks[9], hidden)
        # conv3: PyTorch (oup, hidden, 1, 1) -> matmul weight (hidden, oup)
        w3 = 0.1 * jax.random.normal(ks[10], (hidden, oup), jnp.float32)
        s3, b3 = bn_fold(ks[11], ks[12], ks[13], ks[14], oup)

        # Unfolded f32 copies kept only for the pure-JAX reference check.
        self.raw = dict(w1=w1, s1=s1, b1=b1, w2=w2, s2=s2, b2=b2,
                        w3=w3, s3=s3, b3=b3)

        # Fold BN scales into the conv weights (eval mode) and zero-pad every
        # channel axis to a multiple of 128 (dense lane dim).  Matmul weights
        # are stored bf16; accumulation stays f32 in-kernel.
        cp = _round_up(inp, 128)
        hp = _round_up(hidden, 128)
        op = _round_up(oup, 128)
        self.cp, self.hp, self.op = cp, hp, op
        self.w1p = (jnp.zeros((cp, hp), jnp.float32)
                    .at[:inp, :hidden].set(w1 * s1[None, :]).astype(jnp.bfloat16))
        self.b1p = jnp.zeros((1, hp), jnp.float32).at[0, :hidden].set(b1)
        self.w2p = (jnp.zeros((3, 3, hp), jnp.float32)
                    .at[:, :, :hidden].set(w2 * s2[None, None, :]))
        self.b2p = jnp.zeros((1, hp), jnp.float32).at[0, :hidden].set(b2)
        self.w3p = (jnp.zeros((hp, op), jnp.float32)
                    .at[:hidden, :oup].set(w3 * s3[None, :]).astype(jnp.bfloat16))
        self.b3p = jnp.zeros((1, op), jnp.float32).at[0, :oup].set(b3)

    def __call__(self, x_nchw):
        s = self.stride
        n, cin, h, w = x_nchw.shape
        assert cin == self.inp
        ho = (h - 3) // s + 1
        wo = (w - 3) // s + 1
        hpad, wpad = _round_up(h, s), _round_up(w, s)
        hh, wh = hpad // s, wpad // s
        p = hh * wh

        # Cheap layout glue over the small, un-expanded input (one XLA fusion):
        # NCHW -> NHWC, pad channels to the 128-lane width, space-to-depth by
        # the stride (so the in-kernel depthwise needs only unit-stride
        # slices), cast to bf16.  Padded rows/cols are never read by the
        # valid-padding conv.
        x = jnp.transpose(x_nchw, (0, 2, 3, 1))
        x = jnp.pad(x, ((0, 0), (0, hpad - h), (0, wpad - w), (0, self.cp - cin)))
        x = x.reshape(n, hh, s, wh, s, self.cp).transpose(0, 2, 4, 1, 3, 5)
        x = x.reshape(n, s, s, p, self.cp).astype(jnp.bfloat16)

        kernel = functools.partial(_fused_kernel, stride=s, hh=hh, wh=wh,
                                   ho=ho, wo=wo)
        y = pl.pallas_call(
            kernel,
            out_shape=jax.ShapeDtypeStruct((n, ho, wo, self.op), jnp.float32),
            grid=(n,),
            in_specs=[
                pl.BlockSpec((None, s, s, p, self.cp),
                             lambda i: (i, 0, 0, 0, 0)),
                pl.BlockSpec((self.cp, self.hp), lambda i: (0, 0)),
                pl.BlockSpec((1, self.hp), lambda i: (0, 0)),
                pl.BlockSpec((3, 3, self.hp), lambda i: (0, 0, 0)),
                pl.BlockSpec((1, self.hp), lambda i: (0, 0)),
                pl.BlockSpec((self.hp, self.op), lambda i: (0, 0)),
                pl.BlockSpec((1, self.op), lambda i: (0, 0)),
            ],
            out_specs=pl.BlockSpec((None, ho, wo, self.op),
                                   lambda i: (i, 0, 0, 0)),
            compiler_params=pltpu.CompilerParams(
                dimension_semantics=("parallel",),
                vmem_limit_bytes=32 * 1024 * 1024,
            ),
        )(x, self.w1p, self.b1p, self.w2p, self.b2p, self.w3p, self.b3p)

        y = jnp.transpose(y[..., :self.oup], (0, 3, 1, 2))   # back to NCHW
        if self.use_res_connect:
            # As in the PyTorch module, padding=0 makes this branch
            # shape-incompatible; kept only for structural fidelity.
            return x_nchw + y
        return y


# -----------------------------------------------------------------------------
# Pure-JAX f32 reference (lax convolutions) — validation only.
# -----------------------------------------------------------------------------
def _reference_forward(block, x_nchw):
    prm, s = block.raw, block.stride
    dn = ('NHWC', 'HWIO', 'NHWC')
    x = jnp.transpose(x_nchw, (0, 2, 3, 1))
    h = jax.lax.conv_general_dilated(x, prm['w1'][None, None, :, :], (1, 1),
                                     'VALID', dimension_numbers=dn)
    h = jnp.clip(h * prm['s1'] + prm['b1'], 0.0, 6.0)
    h = jax.lax.conv_general_dilated(h, prm['w2'][:, :, None, :], (s, s),
                                     'VALID', dimension_numbers=dn,
                                     feature_group_count=block.hidden)
    h = jnp.clip(h * prm['s2'] + prm['b2'], 0.0, 6.0)
    h = jax.lax.conv_general_dilated(h, prm['w3'][None, None, :, :], (1, 1),
                                     'VALID', dimension_numbers=dn)
    h = h * prm['s3'] + prm['b3']
    y = jnp.transpose(h, (0, 3, 1, 2))
    if block.use_res_connect:
        return x_nchw + y
    return y


if __name__ == "__main__":
    key = jax.random.PRNGKey(0)
    kx, kp = jax.random.split(key)
    # NCHW input, same convention as the PyTorch module.
    x = jax.random.normal(kx, (2, 4, 16, 16), jnp.float32)

    block = InvertedResidualPallas(inp=4, oup=8, stride=2, expand_ratio=2, key=kp)
    y = jax.jit(block.__call__)(x)
    jax.block_until_ready(y)

    # 3x3 conv with padding=0, stride=2 on 16x16 -> 7x7 spatial, oup channels.
    assert y.shape == (2, 8, 7, 7), y.shape
    assert bool(jnp.all(jnp.isfinite(y)))

    # Validate against the pure-JAX f32 reference (kernel uses bf16 matmuls).
    y_ref = _reference_forward(block, x)
    assert bool(jnp.allclose(y, y_ref, atol=2e-2, rtol=2e-2)), \
        float(jnp.max(jnp.abs(y - y_ref)))
    print("KERNEL_OK")
</pallas_src>

<mosaic_0001>
module attributes {stable_mosaic.version = 11 : i64} {
  func.func @_fused_kernel(%arg0: i32, %arg1: memref<1x2x2x64x128xbf16, #tpu.memory_space<vmem>>, %arg2: memref<128x128xbf16, #tpu.memory_space<vmem>>, %arg3: memref<1x128xf32, #tpu.memory_space<vmem>>, %arg4: memref<3x3x128xf32, #tpu.memory_space<vmem>>, %arg5: memref<1x128xf32, #tpu.memory_space<vmem>>, %arg6: memref<128x128xbf16, #tpu.memory_space<vmem>>, %arg7: memref<1x128xf32, #tpu.memory_space<vmem>>, %arg8: memref<1x7x7x128xf32, #tpu.memory_space<vmem>>) attributes {dimension_semantics = [#tpu.dimension_semantics<parallel>], iteration_bounds = array<i64: 2>, scalar_prefetch = 0 : i64, scratch_operands = 0 : i64, tpu.core_type = #tpu.core_type<tc>, window_params = [{transform_indices = @transform_0, window_bounds = array<i64: 1, 2, 2, 64, 128>}, {pipeline_mode = #tpu.pipeline_mode<synchronous>, transform_indices = @transform_1, window_bounds = array<i64: 128, 128>}, {pipeline_mode = #tpu.pipeline_mode<synchronous>, transform_indices = @transform_2, window_bounds = array<i64: 1, 128>}, {pipeline_mode = #tpu.pipeline_mode<synchronous>, transform_indices = @transform_3, window_bounds = array<i64: 3, 3, 128>}, {pipeline_mode = #tpu.pipeline_mode<synchronous>, transform_indices = @transform_4, window_bounds = array<i64: 1, 128>}, {pipeline_mode = #tpu.pipeline_mode<synchronous>, transform_indices = @transform_5, window_bounds = array<i64: 128, 128>}, {pipeline_mode = #tpu.pipeline_mode<synchronous>, transform_indices = @transform_6, window_bounds = array<i64: 1, 128>}, {transform_indices = @transform_7, window_bounds = array<i64: 1, 7, 7, 128>}]} {
    %c0 = arith.constant 0 : index
    %c0_0 = arith.constant 0 : index
    %0 = vector.load %arg2[%c0, %c0_0] : memref<128x128xbf16, #tpu.memory_space<vmem>>, vector<128x128xbf16>
    %c0_1 = arith.constant 0 : index
    %c0_2 = arith.constant 0 : index
    %1 = vector.load %arg3[%c0_1, %c0_2] : memref<1x128xf32, #tpu.memory_space<vmem>>, vector<1x128xf32>
    %c0_3 = arith.constant 0 : index
    %c0_4 = arith.constant 0 : index
    %c0_5 = arith.constant 0 : index
    %2 = vector.load %arg4[%c0_3, %c0_4, %c0_5] : memref<3x3x128xf32, #tpu.memory_space<vmem>>, vector<3x3x128xf32>
    %c0_6 = arith.constant 0 : index
    %c0_7 = arith.constant 0 : index
    %3 = vector.load %arg5[%c0_6, %c0_7] : memref<1x128xf32, #tpu.memory_space<vmem>>, vector<1x128xf32>
    %c0_8 = arith.constant 0 : index
    %c0_9 = arith.constant 0 : index
    %4 = vector.load %arg6[%c0_8, %c0_9] : memref<128x128xbf16, #tpu.memory_space<vmem>>, vector<128x128xbf16>
    %c0_10 = arith.constant 0 : index
    %c0_11 = arith.constant 0 : index
    %5 = vector.load %arg7[%c0_10, %c0_11] : memref<1x128xf32, #tpu.memory_space<vmem>>, vector<1x128xf32>
    %c0_12 = arith.constant 0 : index
    %c0_13 = arith.constant 0 : index
    %c0_14 = arith.constant 0 : index
    %c0_15 = arith.constant 0 : index
    %c0_16 = arith.constant 0 : index
    %6 = vector.load %arg1[%c0_12, %c0_13, %c0_14, %c0_15, %c0_16] : memref<1x2x2x64x128xbf16, #tpu.memory_space<vmem>>, vector<1x1x1x64x128xbf16>
    %7 = vector.shape_cast %6 : vector<1x1x1x64x128xbf16> to vector<64x128xbf16>
    %cst = arith.constant dense<0.000000e+00> : vector<64x128xf32>
    %8 = tpu.matmul %7, %0, %cst {dimension_numbers = #tpu.dot_dimension_numbers<[1], [0], [0], [1], [0, 0, 1, 1], [], []>} : vector<64x128xbf16>, vector<128x128xbf16>, vector<64x128xf32> -> vector<64x128xf32>
    %9 = vector.broadcast %1 : vector<1x128xf32> to vector<64x128xf32>
    %10 = arith.addf %8, %9 : vector<64x128xf32>
    %cst_17 = arith.constant 0.000000e+00 : f32
    %cst_18 = arith.constant 6.000000e+00 : f32
    %11 = vector.broadcast %cst_17 : f32 to vector<64x128xf32>
    %12 = arith.maximumf %11, %10 : vector<64x128xf32>
    %13 = vector.broadcast %cst_18 : f32 to vector<64x128xf32>
    %14 = arith.minimumf %13, %12 : vector<64x128xf32>
    %15 = vector.shape_cast %14 : vector<64x128xf32> to vector<8x8x128xf32>
    %c0_19 = arith.constant 0 : index
    %c0_20 = arith.constant 0 : index
    %c1 = arith.constant 1 : index
    %c0_21 = arith.constant 0 : index
    %c0_22 = arith.constant 0 : index
    %16 = vector.load %arg1[%c0_19, %c0_20, %c1, %c0_21, %c0_22] : memref<1x2x2x64x128xbf16, #tpu.memory_space<vmem>>, vector<1x1x1x64x128xbf16>
    %17 = vector.shape_cast %16 : vector<1x1x1x64x128xbf16> to vector<64x128xbf16>
    %cst_23 = arith.constant dense<0.000000e+00> : vector<64x128xf32>
    %18 = tpu.matmul %17, %0, %cst_23 {dimension_numbers = #tpu.dot_dimension_numbers<[1], [0], [0], [1], [0, 0, 1, 1], [], []>} : vector<64x128xbf16>, vector<128x128xbf16>, vector<64x128xf32> -> vector<64x128xf32>
    %19 = vector.broadcast %1 : vector<1x128xf32> to vector<64x128xf32>
    %20 = arith.addf %18, %19 : vector<64x128xf32>
    %cst_24 = arith.constant 0.000000e+00 : f32
    %cst_25 = arith.constant 6.000000e+00 : f32
    %21 = vector.broadcast %cst_24 : f32 to vector<64x128xf32>
    %22 = arith.maximumf %21, %20 : vector<64x128xf32>
    %23 = vector.broadcast %cst_25 : f32 to vector<64x128xf32>
    %24 = arith.minimumf %23, %22 : vector<64x128xf32>
    %25 = vector.shape_cast %24 : vector<64x128xf32> to vector<8x8x128xf32>
    %c0_26 = arith.constant 0 : index
    %c1_27 = arith.constant 1 : index
    %c0_28 = arith.constant 0 : index
    %c0_29 = arith.constant 0 : index
    %c0_30 = arith.constant 0 : index
    %26 = vector.load %arg1[%c0_26, %c1_27, %c0_28, %c0_29, %c0_30] : memref<1x2x2x64x128xbf16, #tpu.memory_space<vmem>>, vector<1x1x1x64x128xbf16>
    %27 = vector.shape_cast %26 : vector<1x1x1x64x128xbf16> to vector<64x128xbf16>
    %cst_31 = arith.constant dense<0.000000e+00> : vector<64x128xf32>
    %28 = tpu.matmul %27, %0, %cst_31 {dimension_numbers = #tpu.dot_dimension_numbers<[1], [0], [0], [1], [0, 0, 1, 1], [], []>} : vector<64x128xbf16>, vector<128x128xbf16>, vector<64x128xf32> -> vector<64x128xf32>
    %29 = vector.broadcast %1 : vector<1x128xf32> to vector<64x128xf32>
    %30 = arith.addf %28, %29 : vector<64x128xf32>
    %cst_32 = arith.constant 0.000000e+00 : f32
    %cst_33 = arith.constant 6.000000e+00 : f32
    %31 = vector.broadcast %cst_32 : f32 to vector<64x128xf32>
    %32 = arith.maximumf %31, %30 : vector<64x128xf32>
    %33 = vector.broadcast %cst_33 : f32 to vector<64x128xf32>
    %34 = arith.minimumf %33, %32 : vector<64x128xf32>
    %35 = vector.shape_cast %34 : vector<64x128xf32> to vector<8x8x128xf32>
    %c0_34 = arith.constant 0 : index
    %c1_35 = arith.constant 1 : index
    %c1_36 = arith.constant 1 : index
    %c0_37 = arith.constant 0 : index
    %c0_38 = arith.constant 0 : index
    %36 = vector.load %arg1[%c0_34, %c1_35, %c1_36, %c0_37, %c0_38] : memref<1x2x2x64x128xbf16, #tpu.memory_space<vmem>>, vector<1x1x1x64x128xbf16>
    %37 = vector.shape_cast %36 : vector<1x1x1x64x128xbf16> to vector<64x128xbf16>
    %cst_39 = arith.constant dense<0.000000e+00> : vector<64x128xf32>
    %38 = tpu.matmul %37, %0, %cst_39 {dimension_numbers = #tpu.dot_dimension_numbers<[1], [0], [0], [1], [0, 0, 1, 1], [], []>} : vector<64x128xbf16>, vector<128x128xbf16>, vector<64x128xf32> -> vector<64x128xf32>
    %39 = vector.broadcast %1 : vector<1x128xf32> to vector<64x128xf32>
    %40 = arith.addf %38, %39 : vector<64x128xf32>
    %cst_40 = arith.constant 0.000000e+00 : f32
    %cst_41 = arith.constant 6.000000e+00 : f32
    %41 = vector.broadcast %cst_40 : f32 to vector<64x128xf32>
    %42 = arith.maximumf %41, %40 : vector<64x128xf32>
    %43 = vector.broadcast %cst_41 : f32 to vector<64x128xf32>
    %44 = arith.minimumf %43, %42 : vector<64x128xf32>
    %45 = vector.shape_cast %44 : vector<64x128xf32> to vector<8x8x128xf32>
    %cst_42 = arith.constant 0.000000e+00 : f32
    %46 = vector.broadcast %cst_42 : f32 to vector<7x128xf32>
    %47 = vector.extract_strided_slice %15 {offsets = [0, 0, 0], sizes = [1, 7, 128], strides = [1, 1, 1]} : vector<8x8x128xf32> to vector<1x7x128xf32>
    %48 = vector.shape_cast %47 : vector<1x7x128xf32> to vector<7x128xf32>
    %49 = vector.extract_strided_slice %2 {offsets = [0, 0, 0], sizes = [1, 1, 128], strides = [1, 1, 1]} : vector<3x3x128xf32> to vector<1x1x128xf32>
    %50 = vector.shape_cast %49 : vector<1x1x128xf32> to vector<1x128xf32>
    %51 = vector.broadcast %50 : vector<1x128xf32> to vector<7x128xf32>
    %52 = arith.mulf %48, %51 : vector<7x128xf32>
    %53 = arith.addf %46, %52 : vector<7x128xf32>
    %54 = vector.extract_strided_slice %25 {offsets = [0, 0, 0], sizes = [1, 7, 128], strides = [1, 1, 1]} : vector<8x8x128xf32> to vector<1x7x128xf32>
    %55 = vector.shape_cast %54 : vector<1x7x128xf32> to vector<7x128xf32>
    %56 = vector.extract_strided_slice %2 {offsets = [0, 1, 0], sizes = [1, 1, 128], strides = [1, 1, 1]} : vector<3x3x128xf32> to vector<1x1x128xf32>
    %57 = vector.shape_cast %56 : vector<1x1x128xf32> to vector<1x128xf32>
    %58 = vector.broadcast %57 : vector<1x128xf32> to vector<7x128xf32>
    %59 = arith.mulf %55, %58 : vector<7x128xf32>
    %60 = arith.addf %53, %59 : vector<7x128xf32>
    %61 = vector.extract_strided_slice %15 {offsets = [0, 1, 0], sizes = [1, 7, 128], strides = [1, 1, 1]} : vector<8x8x128xf32> to vector<1x7x128xf32>
    %62 = vector.shape_cast %61 : vector<1x7x128xf32> to vector<7x128xf32>
    %63 = vector.extract_strided_slice %2 {offsets = [0, 2, 0], sizes = [1, 1, 128], strides = [1, 1, 1]} : vector<3x3x128xf32> to vector<1x1x128xf32>
    %64 = vector.shape_cast %63 : vector<1x1x128xf32> to vector<1x128xf32>
    %65 = vector.broadcast %64 : vector<1x128xf32> to vector<7x128xf32>
    %66 = arith.mulf %62, %65 : vector<7x128xf32>
    %67 = arith.addf %60, %66 : vector<7x128xf32>
    %68 = vector.extract_strided_slice %35 {offsets = [0, 0, 0], sizes = [1, 7, 128], strides = [1, 1, 1]} : vector<8x8x128xf32> to vector<1x7x128xf32>
    %69 = vector.shape_cast %68 : vector<1x7x128xf32> to vector<7x128xf32>
    %70 = vector.extract_strided_slice %2 {offsets = [1, 0, 0], sizes = [1, 1, 128], strides = [1, 1, 1]} : vector<3x3x128xf32> to vector<1x1x128xf32>
    %71 = vector.shape_cast %70 : vector<1x1x128xf32> to vector<1x128xf32>
    %72 = vector.broadcast %71 : vector<1x128xf32> to vector<7x128xf32>
    %73 = arith.mulf %69, %72 : vector<7x128xf32>
    %74 = arith.addf %67, %73 : vector<7x128xf32>
    %75 = vector.extract_strided_slice %45 {offsets = [0, 0, 0], sizes = [1, 7, 128], strides = [1, 1, 1]} : vector<8x8x128xf32> to vector<1x7x128xf32>
    %76 = vector.shape_cast %75 : vector<1x7x128xf32> to vector<7x128xf32>
    %77 = vector.extract_strided_slice %2 {offsets = [1, 1, 0], sizes = [1, 1, 128], strides = [1, 1, 1]} : vector<3x3x128xf32> to vector<1x1x128xf32>
    %78 = vector.shape_cast %77 : vector<1x1x128xf32> to vector<1x128xf32>
    %79 = vector.broadcast %78 : vector<1x128xf32> to vector<7x128xf32>
    %80 = arith.mulf %76, %79 : vector<7x128xf32>
    %81 = arith.addf %74, %80 : vector<7x128xf32>
    %82 = vector.extract_strided_slice %35 {offsets = [0, 1, 0], sizes = [1, 7, 128], strides = [1, 1, 1]} : vector<8x8x128xf32> to vector<1x7x128xf32>
    %83 = vector.shape_cast %82 : vector<1x7x128xf32> to vector<7x128xf32>
    %84 = vector.extract_strided_slice %2 {offsets = [1, 2, 0], sizes = [1, 1, 128], strides = [1, 1, 1]} : vector<3x3x128xf32> to vector<1x1x128xf32>
    %85 = vector.shape_cast %84 : vector<1x1x128xf32> to vector<1x128xf32>
    %86 = vector.broadcast %85 : vector<1x128xf32> to vector<7x128xf32>
    %87 = arith.mulf %83, %86 : vector<7x128xf32>
    %88 = arith.addf %81, %87 : vector<7x128xf32>
    %89 = vector.extract_strided_slice %15 {offsets = [1, 0, 0], sizes = [1, 7, 128], strides = [1, 1, 1]} : vector<8x8x128xf32> to vector<1x7x128xf32>
    %90 = vector.shape_cast %89 : vector<1x7x128xf32> to vector<7x128xf32>
    %91 = vector.extract_strided_slice %2 {offsets = [2, 0, 0], sizes = [1, 1, 128], strides = [1, 1, 1]} : vector<3x3x128xf32> to vector<1x1x128xf32>
    %92 = vector.shape_cast %91 : vector<1x1x128xf32> to vector<1x128xf32>
    %93 = vector.broadcast %92 : vector<1x128xf32> to vector<7x128xf32>
    %94 = arith.mulf %90, %93 : vector<7x128xf32>
    %95 = arith.addf %88, %94 : vector<7x128xf32>
    %96 = vector.extract_strided_slice %25 {offsets = [1, 0, 0], sizes = [1, 7, 128], strides = [1, 1, 1]} : vector<8x8x128xf32> to vector<1x7x128xf32>
    %97 = vector.shape_cast %96 : vector<1x7x128xf32> to vector<7x128xf32>
    %98 = vector.extract_strided_slice %2 {offsets = [2, 1, 0], sizes = [1, 1, 128], strides = [1, 1, 1]} : vector<3x3x128xf32> to vector<1x1x128xf32>
    %99 = vector.shape_cast %98 : vector<1x1x128xf32> to vector<1x128xf32>
    %100 = vector.broadcast %99 : vector<1x128xf32> to vector<7x128xf32>
    %101 = arith.mulf %97, %100 : vector<7x128xf32>
    %102 = arith.addf %95, %101 : vector<7x128xf32>
    %103 = vector.extract_strided_slice %15 {offsets = [1, 1, 0], sizes = [1, 7, 128], strides = [1, 1, 1]} : vector<8x8x128xf32> to vector<1x7x128xf32>
    %104 = vector.shape_cast %103 : vector<1x7x128xf32> to vector<7x128xf32>
    %105 = vector.extract_strided_slice %2 {offsets = [2, 2, 0], sizes = [1, 1, 128], strides = [1, 1, 1]} : vector<3x3x128xf32> to vector<1x1x128xf32>
    %106 = vector.shape_cast %105 : vector<1x1x128xf32> to vector<1x128xf32>
    %107 = vector.broadcast %106 : vector<1x128xf32> to vector<7x128xf32>
    %108 = arith.mulf %104, %107 : vector<7x128xf32>
    %109 = arith.addf %102, %108 : vector<7x128xf32>
    %110 = vector.broadcast %3 : vector<1x128xf32> to vector<7x128xf32>
    %111 = arith.addf %109, %110 : vector<7x128xf32>
    %cst_43 = arith.constant 0.000000e+00 : f32
    %cst_44 = arith.constant 6.000000e+00 : f32
    %112 = vector.broadcast %cst_43 : f32 to vector<7x128xf32>
    %113 = arith.maximumf %112, %111 : vector<7x128xf32>
    %114 = vector.broadcast %cst_44 : f32 to vector<7x128xf32>
    %115 = arith.minimumf %114, %113 : vector<7x128xf32>
    %116 = arith.truncf %115 : vector<7x128xf32> to vector<7x128xbf16>
    %cst_45 = arith.constant dense<0.000000e+00> : vector<7x128xf32>
    %117 = tpu.matmul %116, %4, %cst_45 {dimension_numbers = #tpu.dot_dimension_numbers<[1], [0], [0], [1], [0, 0, 1, 1], [], []>} : vector<7x128xbf16>, vector<128x128xbf16>, vector<7x128xf32> -> vector<7x128xf32>
    %118 = vector.broadcast %5 : vector<1x128xf32> to vector<7x128xf32>
    %119 = arith.addf %117, %118 : vector<7x128xf32>
    %c0_46 = arith.constant 0 : index
    %c0_47 = arith.constant 0 : index
    %c0_48 = arith.constant 0 : index
    %c0_49 = arith.constant 0 : index
    %120 = vector.load %arg8[%c0_46, %c0_47, %c0_48, %c0_49] : memref<1x7x7x128xf32, #tpu.memory_space<vmem>>, vector<1x1x7x128xf32>
    %121 = vector.shape_cast %120 : vector<1x1x7x128xf32> to vector<7x128xf32>
    %122 = vector.shape_cast %119 : vector<7x128xf32> to vector<1x1x7x128xf32>
    tpu.vector_store %arg8[%c0_46, %c0_47, %c0_48, %c0_49], %122 {strides = array<i32>} : memref<1x7x7x128xf32, #tpu.memory_space<vmem>>, vector<1x1x7x128xf32>,
    %cst_50 = arith.constant 0.000000e+00 : f32
    %123 = vector.broadcast %cst_50 : f32 to vector<7x128xf32>
    %124 = vector.extract_strided_slice %15 {offsets = [1, 0, 0], sizes = [1, 7, 128], strides = [1, 1, 1]} : vector<8x8x128xf32> to vector<1x7x128xf32>
    %125 = vector.shape_cast %124 : vector<1x7x128xf32> to vector<7x128xf32>
    %126 = vector.extract_strided_slice %2 {offsets = [0, 0, 0], sizes = [1, 1, 128], strides = [1, 1, 1]} : vector<3x3x128xf32> to vector<1x1x128xf32>
    %127 = vector.shape_cast %126 : vector<1x1x128xf32> to vector<1x128xf32>
    %128 = vector.broadcast %127 : vector<1x128xf32> to vector<7x128xf32>
    %129 = arith.mulf %125, %128 : vector<7x128xf32>
    %130 = arith.addf %123, %129 : vector<7x128xf32>
    %131 = vector.extract_strided_slice %25 {offsets = [1, 0, 0], sizes = [1, 7, 128], strides = [1, 1, 1]} : vector<8x8x128xf32> to vector<1x7x128xf32>
    %132 = vector.shape_cast %131 : vector<1x7x128xf32> to vector<7x128xf32>
    %133 = vector.extract_strided_slice %2 {offsets = [0, 1, 0], sizes = [1, 1, 128], strides = [1, 1, 1]} : vector<3x3x128xf32> to vector<1x1x128xf32>
    %134 = vector.shape_cast %133 : vector<1x1x128xf32> to vector<1x128xf32>
    %135 = vector.broadcast %134 : vector<1x128xf32> to vector<7x128xf32>
    %136 = arith.mulf %132, %135 : vector<7x128xf32>
    %137 = arith.addf %130, %136 : vector<7x128xf32>
    %138 = vector.extract_strided_slice %15 {offsets = [1, 1, 0], sizes = [1, 7, 128], strides = [1, 1, 1]} : vector<8x8x128xf32> to vector<1x7x128xf32>
    %139 = vector.shape_cast %138 : vector<1x7x128xf32> to vector<7x128xf32>
    %140 = vector.extract_strided_slice %2 {offsets = [0, 2, 0], sizes = [1, 1, 128], strides = [1, 1, 1]} : vector<3x3x128xf32> to vector<1x1x128xf32>
    %141 = vector.shape_cast %140 : vector<1x1x128xf32> to vector<1x128xf32>
    %142 = vector.broadcast %141 : vector<1x128xf32> to vector<7x128xf32>
    %143 = arith.mulf %139, %142 : vector<7x128xf32>
    %144 = arith.addf %137, %143 : vector<7x128xf32>
    %145 = vector.extract_strided_slice %35 {offsets = [1, 0, 0], sizes = [1, 7, 128], strides = [1, 1, 1]} : vector<8x8x128xf32> to vector<1x7x128xf32>
    %146 = vector.shape_cast %145 : vector<1x7x128xf32> to vector<7x128xf32>
    %147 = vector.extract_strided_slice %2 {offsets = [1, 0, 0], sizes = [1, 1, 128], strides = [1, 1, 1]} : vector<3x3x128xf32> to vector<1x1x128xf32>
    %148 = vector.shape_cast %147 : vector<1x1x128xf32> to vector<1x128xf32>
    %149 = vector.broadcast %148 : vector<1x128xf32> to vector<7x128xf32>
    %150 = arith.mulf %146, %149 : vector<7x128xf32>
    %151 = arith.addf %144, %150 : vector<7x128xf32>
    %152 = vector.extract_strided_slice %45 {offsets = [1, 0, 0], sizes = [1, 7, 128], strides = [1, 1, 1]} : vector<8x8x128xf32> to vector<1x7x128xf32>
    %153 = vector.shape_cast %152 : vector<1x7x128xf32> to vector<7x128xf32>
    %154 = vector.extract_strided_slice %2 {offsets = [1, 1, 0], sizes = [1, 1, 128], strides = [1, 1, 1]} : vector<3x3x128xf32> to vector<1x1x128xf32>
    %155 = vector.shape_cast %154 : vector<1x1x128xf32> to vector<1x128xf32>
    %156 = vector.broadcast %155 : vector<1x128xf32> to vector<7x128xf32>
    %157 = arith.mulf %153, %156 : vector<7x128xf32>
    %158 = arith.addf %151, %157 : vector<7x128xf32>
    %159 = vector.extract_strided_slice %35 {offsets = [1, 1, 0], sizes = [1, 7, 128], strides = [1, 1, 1]} : vector<8x8x128xf32> to vector<1x7x128xf32>
    %160 = vector.shape_cast %159 : vector<1x7x128xf32> to vector<7x128xf32>
    %161 = vector.extract_strided_slice %2 {offsets = [1, 2, 0], sizes = [1, 1, 128], strides = [1, 1, 1]} : vector<3x3x128xf32> to vector<1x1x128xf32>
    %162 = vector.shape_cast %161 : vector<1x1x128xf32> to vector<1x128xf32>
    %163 = vector.broadcast %162 : vector<1x128xf32> to vector<7x128xf32>
    %164 = arith.mulf %160, %163 : vector<7x128xf32>
    %165 = arith.addf %158, %164 : vector<7x128xf32>
    %166 = vector.extract_strided_slice %15 {offsets = [2, 0, 0], sizes = [1, 7, 128], strides = [1, 1, 1]} : vector<8x8x128xf32> to vector<1x7x128xf32>
    %167 = vector.shape_cast %166 : vector<1x7x128xf32> to vector<7x128xf32>
    %168 = vector.extract_strided_slice %2 {offsets = [2, 0, 0], sizes = [1, 1, 128], strides = [1, 1, 1]} : vector<3x3x128xf32> to vector<1x1x128xf32>
    %169 = vector.shape_cast %168 : vector<1x1x128xf32> to vector<1x128xf32>
    %170 = vector.broadcast %169 : vector<1x128xf32> to vector<7x128xf32>
    %171 = arith.mulf %167, %170 : vector<7x128xf32>
    %172 = arith.addf %165, %171 : vector<7x128xf32>
    %173 = vector.extract_strided_slice %25 {offsets = [2, 0, 0], sizes = [1, 7, 128], strides = [1, 1, 1]} : vector<8x8x128xf32> to vector<1x7x128xf32>
    %174 = vector.shape_cast %173 : vector<1x7x128xf32> to vector<7x128xf32>
    %175 = vector.extract_strided_slice %2 {offsets = [2, 1, 0], sizes = [1, 1, 128], strides = [1, 1, 1]} : vector<3x3x128xf32> to vector<1x1x128xf32>
    %176 = vector.shape_cast %175 : vector<1x1x128xf32> to vector<1x128xf32>
    %177 = vector.broadcast %176 : vector<1x128xf32> to vector<7x128xf32>
    %178 = arith.mulf %174, %177 : vector<7x128xf32>
    %179 = arith.addf %172, %178 : vector<7x128xf32>
    %180 = vector.extract_strided_slice %15 {offsets = [2, 1, 0], sizes = [1, 7, 128], strides = [1, 1, 1]} : vector<8x8x128xf32> to vector<1x7x128xf32>
    %181 = vector.shape_cast %180 : vector<1x7x128xf32> to vector<7x128xf32>
    %182 = vector.extract_strided_slice %2 {offsets = [2, 2, 0], sizes = [1, 1, 128], strides = [1, 1, 1]} : vector<3x3x128xf32> to vector<1x1x128xf32>
    %183 = vector.shape_cast %182 : vector<1x1x128xf32> to vector<1x128xf32>
    %184 = vector.broadcast %183 : vector<1x128xf32> to vector<7x128xf32>
    %185 = arith.mulf %181, %184 : vector<7x128xf32>
    %186 = arith.addf %179, %185 : vector<7x128xf32>
    %187 = vector.broadcast %3 : vector<1x128xf32> to vector<7x128xf32>
    %188 = arith.addf %186, %187 : vector<7x128xf32>
    %cst_51 = arith.constant 0.000000e+00 : f32
    %cst_52 = arith.constant 6.000000e+00 : f32
    %189 = vector.broadcast %cst_51 : f32 to vector<7x128xf32>
    %190 = arith.maximumf %189, %188 : vector<7x128xf32>
    %191 = vector.broadcast %cst_52 : f32 to vector<7x128xf32>
    %192 = arith.minimumf %191, %190 : vector<7x128xf32>
    %193 = arith.truncf %192 : vector<7x128xf32> to vector<7x128xbf16>
    %cst_53 = arith.constant dense<0.000000e+00> : vector<7x128xf32>
    %194 = tpu.matmul %193, %4, %cst_53 {dimension_numbers = #tpu.dot_dimension_numbers<[1], [0], [0], [1], [0, 0, 1, 1], [], []>} : vector<7x128xbf16>, vector<128x128xbf16>, vector<7x128xf32> -> vector<7x128xf32>
    %195 = vector.broadcast %5 : vector<1x128xf32> to vector<7x128xf32>
    %196 = arith.addf %194, %195 : vector<7x128xf32>
    %c0_54 = arith.constant 0 : index
    %c1_55 = arith.constant 1 : index
    %c0_56 = arith.constant 0 : index
    %c0_57 = arith.constant 0 : index
    %197 = vector.load %arg8[%c0_54, %c1_55, %c0_56, %c0_57] : memref<1x7x7x128xf32, #tpu.memory_space<vmem>>, vector<1x1x7x128xf32>
    %198 = vector.shape_cast %197 : vector<1x1x7x128xf32> to vector<7x128xf32>
    %199 = vector.shape_cast %196 : vector<7x128xf32> to vector<1x1x7x128xf32>
    tpu.vector_store %arg8[%c0_54, %c1_55, %c0_56, %c0_57], %199 {strides = array<i32>} : memref<1x7x7x128xf32, #tpu.memory_space<vmem>>, vector<1x1x7x128xf32>,
    %cst_58 = arith.constant 0.000000e+00 : f32
    %200 = vector.broadcast %cst_58 : f32 to vector<7x128xf32>
    %201 = vector.extract_strided_slice %15 {offsets = [2, 0, 0], sizes = [1, 7, 128], strides = [1, 1, 1]} : vector<8x8x128xf32> to vector<1x7x128xf32>
    %202 = vector.shape_cast %201 : vector<1x7x128xf32> to vector<7x128xf32>
    %203 = vector.extract_strided_slice %2 {offsets = [0, 0, 0], sizes = [1, 1, 128], strides = [1, 1, 1]} : vector<3x3x128xf32> to vector<1x1x128xf32>
    %204 = vector.shape_cast %203 : vector<1x1x128xf32> to vector<1x128xf32>
    %205 = vector.broadcast %204 : vector<1x128xf32> to vector<7x128xf32>
    %206 = arith.mulf %202, %205 : vector<7x128xf32>
    %207 = arith.addf %200, %206 : vector<7x128xf32>
    %208 = vector.extract_strided_slice %25 {offsets = [2, 0, 0], sizes = [1, 7, 128], strides = [1, 1, 1]} : vector<8x8x128xf32> to vector<1x7x128xf32>
    %209 = vector.shape_cast %208 : vector<1x7x128xf32> to vector<7x128xf32>
    %210 = vector.extract_strided_slice %2 {offsets = [0, 1, 0], sizes = [1, 1, 128], strides = [1, 1, 1]} : vector<3x3x128xf32> to vector<1x1x128xf32>
    %211 = vector.shape_cast %210 : vector<1x1x128xf32> to vector<1x128xf32>
    %212 = vector.broadcast %211 : vector<1x128xf32> to vector<7x128xf32>
    %213 = arith.mulf %209, %212 : vector<7x128xf32>
    %214 = arith.addf %207, %213 : vector<7x128xf32>
    %215 = vector.extract_strided_slice %15 {offsets = [2, 1, 0], sizes = [1, 7, 128], strides = [1, 1, 1]} : vector<8x8x128xf32> to vector<1x7x128xf32>
    %216 = vector.shape_cast %215 : vector<1x7x128xf32> to vector<7x128xf32>
    %217 = vector.extract_strided_slice %2 {offsets = [0, 2, 0], sizes = [1, 1, 128], strides = [1, 1, 1]} : vector<3x3x128xf32> to vector<1x1x128xf32>
    %218 = vector.shape_cast %217 : vector<1x1x128xf32> to vector<1x128xf32>
    %219 = vector.broadcast %218 : vector<1x128xf32> to vector<7x128xf32>
    %220 = arith.mulf %216, %219 : vector<7x128xf32>
    %221 = arith.addf %214, %220 : vector<7x128xf32>
    %222 = vector.extract_strided_slice %35 {offsets = [2, 0, 0], sizes = [1, 7, 128], strides = [1, 1, 1]} : vector<8x8x128xf32> to vector<1x7x128xf32>
    %223 = vector.shape_cast %222 : vector<1x7x128xf32> to vector<7x128xf32>
    %224 = vector.extract_strided_slice %2 {offsets = [1, 0, 0], sizes = [1, 1, 128], strides = [1, 1, 1]} : vector<3x3x128xf32> to vector<1x1x128xf32>
    %225 = vector.shape_cast %224 : vector<1x1x128xf32> to vector<1x128xf32>
    %226 = vector.broadcast %225 : vector<1x128xf32> to vector<7x128xf32>
    %227 = arith.mulf %223, %226 : vector<7x128xf32>
    %228 = arith.addf %221, %227 : vector<7x128xf32>
    %229 = vector.extract_strided_slice %45 {offsets = [2, 0, 0], sizes = [1, 7, 128], strides = [1, 1, 1]} : vector<8x8x128xf32> to vector<1x7x128xf32>
    %230 = vector.shape_cast %229 : vector<1x7x128xf32> to vector<7x128xf32>
    %231 = vector.extract_strided_slice %2 {offsets = [1, 1, 0], sizes = [1, 1, 128], strides = [1, 1, 1]} : vector<3x3x128xf32> to vector<1x1x128xf32>
    %232 = vector.shape_cast %231 : vector<1x1x128xf32> to vector<1x128xf32>
    %233 = vector.broadcast %232 : vector<1x128xf32> to vector<7x128xf32>
    %234 = arith.mulf %230, %233 : vector<7x128xf32>
    %235 = arith.addf %228, %234 : vector<7x128xf32>
    %236 = vector.extract_strided_slice %35 {offsets = [2, 1, 0], sizes = [1, 7, 128], strides = [1, 1, 1]} : vector<8x8x128xf32> to vector<1x7x128xf32>
    %237 = vector.shape_cast %236 : vector<1x7x128xf32> to vector<7x128xf32>
    %238 = vector.extract_strided_slice %2 {offsets = [1, 2, 0], sizes = [1, 1, 128], strides = [1, 1, 1]} : vector<3x3x128xf32> to vector<1x1x128xf32>
    %239 = vector.shape_cast %238 : vector<1x1x128xf32> to vector<1x128xf32>
    %240 = vector.broadcast %239 : vector<1x128xf32> to vector<7x128xf32>
    %241 = arith.mulf %237, %240 : vector<7x128xf32>
    %242 = arith.addf %235, %241 : vector<7x128xf32>
    %243 = vector.extract_strided_slice %15 {offsets = [3, 0, 0], sizes = [1, 7, 128], strides = [1, 1, 1]} : vector<8x8x128xf32> to vector<1x7x128xf32>
    %244 = vector.shape_cast %243 : vector<1x7x128xf32> to vector<7x128xf32>
    %245 = vector.extract_strided_slice %2 {offsets = [2, 0, 0], sizes = [1, 1, 128], strides = [1, 1, 1]} : vector<3x3x128xf32> to vector<1x1x128xf32>
    %246 = vector.shape_cast %245 : vector<1x1x128xf32> to vector<1x128xf32>
    %247 = vector.broadcast %246 : vector<1x128xf32> to vector<7x128xf32>
    %248 = arith.mulf %244, %247 : vector<7x128xf32>
    %249 = arith.addf %242, %248 : vector<7x128xf32>
    %250 = vector.extract_strided_slice %25 {offsets = [3, 0, 0], sizes = [1, 7, 128], strides = [1, 1, 1]} : vector<8x8x128xf32> to vector<1x7x128xf32>
    %251 = vector.shape_cast %250 : vector<1x7x128xf32> to vector<7x128xf32>
    %252 = vector.extract_strided_slice %2 {offsets = [2, 1, 0], sizes = [1, 1, 128], strides = [1, 1, 1]} : vector<3x3x128xf32> to vector<1x1x128xf32>
    %253 = vector.shape_cast %252 : vector<1x1x128xf32> to vector<1x128xf32>
    %254 = vector.broadcast %253 : vector<1x128xf32> to vector<7x128xf32>
    %255 = arith.mulf %251, %254 : vector<7x128xf32>
    %256 = arith.addf %249, %255 : vector<7x128xf32>
    %257 = vector.extract_strided_slice %15 {offsets = [3, 1, 0], sizes = [1, 7, 128], strides = [1, 1, 1]} : vector<8x8x128xf32> to vector<1x7x128xf32>
    %258 = vector.shape_cast %257 : vector<1x7x128xf32> to vector<7x128xf32>
    %259 = vector.extract_strided_slice %2 {offsets = [2, 2, 0], sizes = [1, 1, 128], strides = [1, 1, 1]} : vector<3x3x128xf32> to vector<1x1x128xf32>
    %260 = vector.shape_cast %259 : vector<1x1x128xf32> to vector<1x128xf32>
    %261 = vector.broadcast %260 : vector<1x128xf32> to vector<7x128xf32>
    %262 = arith.mulf %258, %261 : vector<7x128xf32>
    %263 = arith.addf %256, %262 : vector<7x128xf32>
    %264 = vector.broadcast %3 : vector<1x128xf32> to vector<7x128xf32>
    %265 = arith.addf %263, %264 : vector<7x128xf32>
    %cst_59 = arith.constant 0.000000e+00 : f32
    %cst_60 = arith.constant 6.000000e+00 : f32
    %266 = vector.broadcast %cst_59 : f32 to vector<7x128xf32>
    %267 = arith.maximumf %266, %265 : vector<7x128xf32>
    %268 = vector.broadcast %cst_60 : f32 to vector<7x128xf32>
    %269 = arith.minimumf %268, %267 : vector<7x128xf32>
    %270 = arith.truncf %269 : vector<7x128xf32> to vector<7x128xbf16>
    %cst_61 = arith.constant dense<0.000000e+00> : vector<7x128xf32>
    %271 = tpu.matmul %270, %4, %cst_61 {dimension_numbers = #tpu.dot_dimension_numbers<[1], [0], [0], [1], [0, 0, 1, 1], [], []>} : vector<7x128xbf16>, vector<128x128xbf16>, vector<7x128xf32> -> vector<7x128xf32>
    %272 = vector.broadcast %5 : vector<1x128xf32> to vector<7x128xf32>
    %273 = arith.addf %271, %272 : vector<7x128xf32>
    %c0_62 = arith.constant 0 : index
    %c2 = arith.constant 2 : index
    %c0_63 = arith.constant 0 : index
    %c0_64 = arith.constant 0 : index
    %274 = vector.load %arg8[%c0_62, %c2, %c0_63, %c0_64] : memref<1x7x7x128xf32, #tpu.memory_space<vmem>>, vector<1x1x7x128xf32>
    %275 = vector.shape_cast %274 : vector<1x1x7x128xf32> to vector<7x128xf32>
    %276 = vector.shape_cast %273 : vector<7x128xf32> to vector<1x1x7x128xf32>
    tpu.vector_store %arg8[%c0_62, %c2, %c0_63, %c0_64], %276 {strides = array<i32>} : memref<1x7x7x128xf32, #tpu.memory_space<vmem>>, vector<1x1x7x128xf32>,
    %cst_65 = arith.constant 0.000000e+00 : f32
    %277 = vector.broadcast %cst_65 : f32 to vector<7x128xf32>
    %278 = vector.extract_strided_slice %15 {offsets = [3, 0, 0], sizes = [1, 7, 128], strides = [1, 1, 1]} : vector<8x8x128xf32> to vector<1x7x128xf32>
    %279 = vector.shape_cast %278 : vector<1x7x128xf32> to vector<7x128xf32>
    %280 = vector.extract_strided_slice %2 {offsets = [0, 0, 0], sizes = [1, 1, 128], strides = [1, 1, 1]} : vector<3x3x128xf32> to vector<1x1x128xf32>
    %281 = vector.shape_cast %280 : vector<1x1x128xf32> to vector<1x128xf32>
    %282 = vector.broadcast %281 : vector<1x128xf32> to vector<7x128xf32>
    %283 = arith.mulf %279, %282 : vector<7x128xf32>
    %284 = arith.addf %277, %283 : vector<7x128xf32>
    %285 = vector.extract_strided_slice %25 {offsets = [3, 0, 0], sizes = [1, 7, 128], strides = [1, 1, 1]} : vector<8x8x128xf32> to vector<1x7x128xf32>
    %286 = vector.shape_cast %285 : vector<1x7x128xf32> to vector<7x128xf32>
    %287 = vector.extract_strided_slice %2 {offsets = [0, 1, 0], sizes = [1, 1, 128], strides = [1, 1, 1]} : vector<3x3x128xf32> to vector<1x1x128xf32>
    %288 = vector.shape_cast %287 : vector<1x1x128xf32> to vector<1x128xf32>
    %289 = vector.broadcast %288 : vector<1x128xf32> to vector<7x128xf32>
    %290 = arith.mulf %286, %289 : vector<7x128xf32>
    %291 = arith.addf %284, %290 : vector<7x128xf32>
    %292 = vector.extract_strided_slice %15 {offsets = [3, 1, 0], sizes = [1, 7, 128], strides = [1, 1, 1]} : vector<8x8x128xf32> to vector<1x7x128xf32>
    %293 = vector.shape_cast %292 : vector<1x7x128xf32> to vector<7x128xf32>
    %294 = vector.extract_strided_slice %2 {offsets = [0, 2, 0], sizes = [1, 1, 128], strides = [1, 1, 1]} : vector<3x3x128xf32> to vector<1x1x128xf32>
    %295 = vector.shape_cast %294 : vector<1x1x128xf32> to vector<1x128xf32>
    %296 = vector.broadcast %295 : vector<1x128xf32> to vector<7x128xf32>
    %297 = arith.mulf %293, %296 : vector<7x128xf32>
    %298 = arith.addf %291, %297 : vector<7x128xf32>
    %299 = vector.extract_strided_slice %35 {offsets = [3, 0, 0], sizes = [1, 7, 128], strides = [1, 1, 1]} : vector<8x8x128xf32> to vector<1x7x128xf32>
    %300 = vector.shape_cast %299 : vector<1x7x128xf32> to vector<7x128xf32>
    %301 = vector.extract_strided_slice %2 {offsets = [1, 0, 0], sizes = [1, 1, 128], strides = [1, 1, 1]} : vector<3x3x128xf32> to vector<1x1x128xf32>
    %302 = vector.shape_cast %301 : vector<1x1x128xf32> to vector<1x128xf32>
    %303 = vector.broadcast %302 : vector<1x128xf32> to vector<7x128xf32>
    %304 = arith.mulf %300, %303 : vector<7x128xf32>
    %305 = arith.addf %298, %304 : vector<7x128xf32>
    %306 = vector.extract_strided_slice %45 {offsets = [3, 0, 0], sizes = [1, 7, 128], strides = [1, 1, 1]} : vector<8x8x128xf32> to vector<1x7x128xf32>
    %307 = vector.shape_cast %306 : vector<1x7x128xf32> to vector<7x128xf32>
    %308 = vector.extract_strided_slice %2 {offsets = [1, 1, 0], sizes = [1, 1, 128], strides = [1, 1, 1]} : vector<3x3x128xf32> to vector<1x1x128xf32>
    %309 = vector.shape_cast %308 : vector<1x1x128xf32> to vector<1x128xf32>
    %310 = vector.broadcast %309 : vector<1x128xf32> to vector<7x128xf32>
    %311 = arith.mulf %307, %310 : vector<7x128xf32>
    %312 = arith.addf %305, %311 : vector<7x128xf32>
    %313 = vector.extract_strided_slice %35 {offsets = [3, 1, 0], sizes = [1, 7, 128], strides = [1, 1, 1]} : vector<8x8x128xf32> to vector<1x7x128xf32>
    %314 = vector.shape_cast %313 : vector<1x7x128xf32> to vector<7x128xf32>
    %315 = vector.extract_strided_slice %2 {offsets = [1, 2, 0], sizes = [1, 1, 128], strides = [1, 1, 1]} : vector<3x3x128xf32> to vector<1x1x128xf32>
    %316 = vector.shape_cast %315 : vector<1x1x128xf32> to vector<1x128xf32>
    %317 = vector.broadcast %316 : vector<1x128xf32> to vector<7x128xf32>
    %318 = arith.mulf %314, %317 : vector<7x128xf32>
    %319 = arith.addf %312, %318 : vector<7x128xf32>
    %320 = vector.extract_strided_slice %15 {offsets = [4, 0, 0], sizes = [1, 7, 128], strides = [1, 1, 1]} : vector<8x8x128xf32> to vector<1x7x128xf32>
    %321 = vector.shape_cast %320 : vector<1x7x128xf32> to vector<7x128xf32>
    %322 = vector.extract_strided_slice %2 {offsets = [2, 0, 0], sizes = [1, 1, 128], strides = [1, 1, 1]} : vector<3x3x128xf32> to vector<1x1x128xf32>
    %323 = vector.shape_cast %322 : vector<1x1x128xf32> to vector<1x128xf32>
    %324 = vector.broadcast %323 : vector<1x128xf32> to vector<7x128xf32>
    %325 = arith.mulf %321, %324 : vector<7x128xf32>
    %326 = arith.addf %319, %325 : vector<7x128xf32>
    %327 = vector.extract_strided_slice %25 {offsets = [4, 0, 0], sizes = [1, 7, 128], strides = [1, 1, 1]} : vector<8x8x128xf32> to vector<1x7x128xf32>
    %328 = vector.shape_cast %327 : vector<1x7x128xf32> to vector<7x128xf32>
    %329 = vector.extract_strided_slice %2 {offsets = [2, 1, 0], sizes = [1, 1, 128], strides = [1, 1, 1]} : vector<3x3x128xf32> to vector<1x1x128xf32>
    %330 = vector.shape_cast %329 : vector<1x1x128xf32> to vector<1x128xf32>
    %331 = vector.broadcast %330 : vector<1x128xf32> to vector<7x128xf32>
    %332 = arith.mulf %328, %331 : vector<7x128xf32>
    %333 = arith.addf %326, %332 : vector<7x128xf32>
    %334 = vector.extract_strided_slice %15 {offsets = [4, 1, 0], sizes = [1, 7, 128], strides = [1, 1, 1]} : vector<8x8x128xf32> to vector<1x7x128xf32>
    %335 = vector.shape_cast %334 : vector<1x7x128xf32> to vector<7x128xf32>
    %336 = vector.extract_strided_slice %2 {offsets = [2, 2, 0], sizes = [1, 1, 128], strides = [1, 1, 1]} : vector<3x3x128xf32> to vector<1x1x128xf32>
    %337 = vector.shape_cast %336 : vector<1x1x128xf32> to vector<1x128xf32>
    %338 = vector.broadcast %337 : vector<1x128xf32> to vector<7x128xf32>
    %339 = arith.mulf %335, %338 : vector<7x128xf32>
    %340 = arith.addf %333, %339 : vector<7x128xf32>
    %341 = vector.broadcast %3 : vector<1x128xf32> to vector<7x128xf32>
    %342 = arith.addf %340, %341 : vector<7x128xf32>
    %cst_66 = arith.constant 0.000000e+00 : f32
    %cst_67 = arith.constant 6.000000e+00 : f32
    %343 = vector.broadcast %cst_66 : f32 to vector<7x128xf32>
    %344 = arith.maximumf %343, %342 : vector<7x128xf32>
    %345 = vector.broadcast %cst_67 : f32 to vector<7x128xf32>
    %346 = arith.minimumf %345, %344 : vector<7x128xf32>
    %347 = arith.truncf %346 : vector<7x128xf32> to vector<7x128xbf16>
    %cst_68 = arith.constant dense<0.000000e+00> : vector<7x128xf32>
    %348 = tpu.matmul %347, %4, %cst_68 {dimension_numbers = #tpu.dot_dimension_numbers<[1], [0], [0], [1], [0, 0, 1, 1], [], []>} : vector<7x128xbf16>, vector<128x128xbf16>, vector<7x128xf32> -> vector<7x128xf32>
    %349 = vector.broadcast %5 : vector<1x128xf32> to vector<7x128xf32>
    %350 = arith.addf %348, %349 : vector<7x128xf32>
    %c0_69 = arith.constant 0 : index
    %c3 = arith.constant 3 : index
    %c0_70 = arith.constant 0 : index
    %c0_71 = arith.constant 0 : index
    %351 = vector.load %arg8[%c0_69, %c3, %c0_70, %c0_71] : memref<1x7x7x128xf32, #tpu.memory_space<vmem>>, vector<1x1x7x128xf32>
    %352 = vector.shape_cast %351 : vector<1x1x7x128xf32> to vector<7x128xf32>
    %353 = vector.shape_cast %350 : vector<7x128xf32> to vector<1x1x7x128xf32>
    tpu.vector_store %arg8[%c0_69, %c3, %c0_70, %c0_71], %353 {strides = array<i32>} : memref<1x7x7x128xf32, #tpu.memory_space<vmem>>, vector<1x1x7x128xf32>,
    %cst_72 = arith.constant 0.000000e+00 : f32
    %354 = vector.broadcast %cst_72 : f32 to vector<7x128xf32>
    %355 = vector.extract_strided_slice %15 {offsets = [4, 0, 0], sizes = [1, 7, 128], strides = [1, 1, 1]} : vector<8x8x128xf32> to vector<1x7x128xf32>
    %356 = vector.shape_cast %355 : vector<1x7x128xf32> to vector<7x128xf32>
    %357 = vector.extract_strided_slice %2 {offsets = [0, 0, 0], sizes = [1, 1, 128], strides = [1, 1, 1]} : vector<3x3x128xf32> to vector<1x1x128xf32>
    %358 = vector.shape_cast %357 : vector<1x1x128xf32> to vector<1x128xf32>
    %359 = vector.broadcast %358 : vector<1x128xf32> to vector<7x128xf32>
    %360 = arith.mulf %356, %359 : vector<7x128xf32>
    %361 = arith.addf %354, %360 : vector<7x128xf32>
    %362 = vector.extract_strided_slice %25 {offsets = [4, 0, 0], sizes = [1, 7, 128], strides = [1, 1, 1]} : vector<8x8x128xf32> to vector<1x7x128xf32>
    %363 = vector.shape_cast %362 : vector<1x7x128xf32> to vector<7x128xf32>
    %364 = vector.extract_strided_slice %2 {offsets = [0, 1, 0], sizes = [1, 1, 128], strides = [1, 1, 1]} : vector<3x3x128xf32> to vector<1x1x128xf32>
    %365 = vector.shape_cast %364 : vector<1x1x128xf32> to vector<1x128xf32>
    %366 = vector.broadcast %365 : vector<1x128xf32> to vector<7x128xf32>
    %367 = arith.mulf %363, %366 : vector<7x128xf32>
    %368 = arith.addf %361, %367 : vector<7x128xf32>
    %369 = vector.extract_strided_slice %15 {offsets = [4, 1, 0], sizes = [1, 7, 128], strides = [1, 1, 1]} : vector<8x8x128xf32> to vector<1x7x128xf32>
    %370 = vector.shape_cast %369 : vector<1x7x128xf32> to vector<7x128xf32>
    %371 = vector.extract_strided_slice %2 {offsets = [0, 2, 0], sizes = [1, 1, 128], strides = [1, 1, 1]} : vector<3x3x128xf32> to vector<1x1x128xf32>
    %372 = vector.shape_cast %371 : vector<1x1x128xf32> to vector<1x128xf32>
    %373 = vector.broadcast %372 : vector<1x128xf32> to vector<7x128xf32>
    %374 = arith.mulf %370, %373 : vector<7x128xf32>
    %375 = arith.addf %368, %374 : vector<7x128xf32>
    %376 = vector.extract_strided_slice %35 {offsets = [4, 0, 0], sizes = [1, 7, 128], strides = [1, 1, 1]} : vector<8x8x128xf32> to vector<1x7x128xf32>
    %377 = vector.shape_cast %376 : vector<1x7x128xf32> to vector<7x128xf32>
    %378 = vector.extract_strided_slice %2 {offsets = [1, 0, 0], sizes = [1, 1, 128], strides = [1, 1, 1]} : vector<3x3x128xf32> to vector<1x1x128xf32>
    %379 = vector.shape_cast %378 : vector<1x1x128xf32> to vector<1x128xf32>
    %380 = vector.broadcast %379 : vector<1x128xf32> to vector<7x128xf32>
    %381 = arith.mulf %377, %380 : vector<7x128xf32>
    %382 = arith.addf %375, %381 : vector<7x128xf32>
    %383 = vector.extract_strided_slice %45 {offsets = [4, 0, 0], sizes = [1, 7, 128], strides = [1, 1, 1]} : vector<8x8x128xf32> to vector<1x7x128xf32>
    %384 = vector.shape_cast %383 : vector<1x7x128xf32> to vector<7x128xf32>
    %385 = vector.extract_strided_slice %2 {offsets = [1, 1, 0], sizes = [1, 1, 128], strides = [1, 1, 1]} : vector<3x3x128xf32> to vector<1x1x128xf32>
    %386 = vector.shape_cast %385 : vector<1x1x128xf32> to vector<1x128xf32>
    %387 = vector.broadcast %386 : vector<1x128xf32> to vector<7x128xf32>
    %388 = arith.mulf %384, %387 : vector<7x128xf32>
    %389 = arith.addf %382, %388 : vector<7x128xf32>
    %390 = vector.extract_strided_slice %35 {offsets = [4, 1, 0], sizes = [1, 7, 128], strides = [1, 1, 1]} : vector<8x8x128xf32> to vector<1x7x128xf32>
    %391 = vector.shape_cast %390 : vector<1x7x128xf32> to vector<7x128xf32>
    %392 = vector.extract_strided_slice %2 {offsets = [1, 2, 0], sizes = [1, 1, 128], strides = [1, 1, 1]} : vector<3x3x128xf32> to vector<1x1x128xf32>
    %393 = vector.shape_cast %392 : vector<1x1x128xf32> to vector<1x128xf32>
    %394 = vector.broadcast %393 : vector<1x128xf32> to vector<7x128xf32>
    %395 = arith.mulf %391, %394 : vector<7x128xf32>
    %396 = arith.addf %389, %395 : vector<7x128xf32>
    %397 = vector.extract_strided_slice %15 {offsets = [5, 0, 0], sizes = [1, 7, 128], strides = [1, 1, 1]} : vector<8x8x128xf32> to vector<1x7x128xf32>
    %398 = vector.shape_cast %397 : vector<1x7x128xf32> to vector<7x128xf32>
    %399 = vector.extract_strided_slice %2 {offsets = [2, 0, 0], sizes = [1, 1, 128], strides = [1, 1, 1]} : vector<3x3x128xf32> to vector<1x1x128xf32>
    %400 = vector.shape_cast %399 : vector<1x1x128xf32> to vector<1x128xf32>
    %401 = vector.broadcast %400 : vector<1x128xf32> to vector<7x128xf32>
    %402 = arith.mulf %398, %401 : vector<7x128xf32>
    %403 = arith.addf %396, %402 : vector<7x128xf32>
    %404 = vector.extract_strided_slice %25 {offsets = [5, 0, 0], sizes = [1, 7, 128], strides = [1, 1, 1]} : vector<8x8x128xf32> to vector<1x7x128xf32>
    %405 = vector.shape_cast %404 : vector<1x7x128xf32> to vector<7x128xf32>
    %406 = vector.extract_strided_slice %2 {offsets = [2, 1, 0], sizes = [1, 1, 128], strides = [1, 1, 1]} : vector<3x3x128xf32> to vector<1x1x128xf32>
    %407 = vector.shape_cast %406 : vector<1x1x128xf32> to vector<1x128xf32>
    %408 = vector.broadcast %407 : vector<1x128xf32> to vector<7x128xf32>
    %409 = arith.mulf %405, %408 : vector<7x128xf32>
    %410 = arith.addf %403, %409 : vector<7x128xf32>
    %411 = vector.extract_strided_slice %15 {offsets = [5, 1, 0], sizes = [1, 7, 128], strides = [1, 1, 1]} : vector<8x8x128xf32> to vector<1x7x128xf32>
    %412 = vector.shape_cast %411 : vector<1x7x128xf32> to vector<7x128xf32>
    %413 = vector.extract_strided_slice %2 {offsets = [2, 2, 0], sizes = [1, 1, 128], strides = [1, 1, 1]} : vector<3x3x128xf32> to vector<1x1x128xf32>
    %414 = vector.shape_cast %413 : vector<1x1x128xf32> to vector<1x128xf32>
    %415 = vector.broadcast %414 : vector<1x128xf32> to vector<7x128xf32>
    %416 = arith.mulf %412, %415 : vector<7x128xf32>
    %417 = arith.addf %410, %416 : vector<7x128xf32>
    %418 = vector.broadcast %3 : vector<1x128xf32> to vector<7x128xf32>
    %419 = arith.addf %417, %418 : vector<7x128xf32>
    %cst_73 = arith.constant 0.000000e+00 : f32
    %cst_74 = arith.constant 6.000000e+00 : f32
    %420 = vector.broadcast %cst_73 : f32 to vector<7x128xf32>
    %421 = arith.maximumf %420, %419 : vector<7x128xf32>
    %422 = vector.broadcast %cst_74 : f32 to vector<7x128xf32>
    %423 = arith.minimumf %422, %421 : vector<7x128xf32>
    %424 = arith.truncf %423 : vector<7x128xf32> to vector<7x128xbf16>
    %cst_75 = arith.constant dense<0.000000e+00> : vector<7x128xf32>
    %425 = tpu.matmul %424, %4, %cst_75 {dimension_numbers = #tpu.dot_dimension_numbers<[1], [0], [0], [1], [0, 0, 1, 1], [], []>} : vector<7x128xbf16>, vector<128x128xbf16>, vector<7x128xf32> -> vector<7x128xf32>
    %426 = vector.broadcast %5 : vector<1x128xf32> to vector<7x128xf32>
    %427 = arith.addf %425, %426 : vector<7x128xf32>
    %c0_76 = arith.constant 0 : index
    %c4 = arith.constant 4 : index
    %c0_77 = arith.constant 0 : index
    %c0_78 = arith.constant 0 : index
    %428 = vector.load %arg8[%c0_76, %c4, %c0_77, %c0_78] : memref<1x7x7x128xf32, #tpu.memory_space<vmem>>, vector<1x1x7x128xf32>
    %429 = vector.shape_cast %428 : vector<1x1x7x128xf32> to vector<7x128xf32>
    %430 = vector.shape_cast %427 : vector<7x128xf32> to vector<1x1x7x128xf32>
    tpu.vector_store %arg8[%c0_76, %c4, %c0_77, %c0_78], %430 {strides = array<i32>} : memref<1x7x7x128xf32, #tpu.memory_space<vmem>>, vector<1x1x7x128xf32>,
    %cst_79 = arith.constant 0.000000e+00 : f32
    %431 = vector.broadcast %cst_79 : f32 to vector<7x128xf32>
    %432 = vector.extract_strided_slice %15 {offsets = [5, 0, 0], sizes = [1, 7, 128], strides = [1, 1, 1]} : vector<8x8x128xf32> to vector<1x7x128xf32>
    %433 = vector.shape_cast %432 : vector<1x7x128xf32> to vector<7x128xf32>
    %434 = vector.extract_strided_slice %2 {offsets = [0, 0, 0], sizes = [1, 1, 128], strides = [1, 1, 1]} : vector<3x3x128xf32> to vector<1x1x128xf32>
    %435 = vector.shape_cast %434 : vector<1x1x128xf32> to vector<1x128xf32>
    %436 = vector.broadcast %435 : vector<1x128xf32> to vector<7x128xf32>
    %437 = arith.mulf %433, %436 : vector<7x128xf32>
    %438 = arith.addf %431, %437 : vector<7x128xf32>
    %439 = vector.extract_strided_slice %25 {offsets = [5, 0, 0], sizes = [1, 7, 128], strides = [1, 1, 1]} : vector<8x8x128xf32> to vector<1x7x128xf32>
    %440 = vector.shape_cast %439 : vector<1x7x128xf32> to vector<7x128xf32>
    %441 = vector.extract_strided_slice %2 {offsets = [0, 1, 0], sizes = [1, 1, 128], strides = [1, 1, 1]} : vector<3x3x128xf32> to vector<1x1x128xf32>
    %442 = vector.shape_cast %441 : vector<1x1x128xf32> to vector<1x128xf32>
    %443 = vector.broadcast %442 : vector<1x128xf32> to vector<7x128xf32>
    %444 = arith.mulf %440, %443 : vector<7x128xf32>
    %445 = arith.addf %438, %444 : vector<7x128xf32>
    %446 = vector.extract_strided_slice %15 {offsets = [5, 1, 0], sizes = [1, 7, 128], strides = [1, 1, 1]} : vector<8x8x128xf32> to vector<1x7x128xf32>
    %447 = vector.shape_cast %446 : vector<1x7x128xf32> to vector<7x128xf32>
    %448 = vector.extract_strided_slice %2 {offsets = [0, 2, 0], sizes = [1, 1, 128], strides = [1, 1, 1]} : vector<3x3x128xf32> to vector<1x1x128xf32>
    %449 = vector.shape_cast %448 : vector<1x1x128xf32> to vector<1x128xf32>
    %450 = vector.broadcast %449 : vector<1x128xf32> to vector<7x128xf32>
    %451 = arith.mulf %447, %450 : vector<7x128xf32>
    %452 = arith.addf %445, %451 : vector<7x128xf32>
    %453 = vector.extract_strided_slice %35 {offsets = [5, 0, 0], sizes = [1, 7, 128], strides = [1, 1, 1]} : vector<8x8x128xf32> to vector<1x7x128xf32>
    %454 = vector.shape_cast %453 : vector<1x7x128xf32> to vector<7x128xf32>
    %455 = vector.extract_strided_slice %2 {offsets = [1, 0, 0], sizes = [1, 1, 128], strides = [1, 1, 1]} : vector<3x3x128xf32> to vector<1x1x128xf32>
    %456 = vector.shape_cast %455 : vector<1x1x128xf32> to vector<1x128xf32>
    %457 = vector.broadcast %456 : vector<1x128xf32> to vector<7x128xf32>
    %458 = arith.mulf %454, %457 : vector<7x128xf32>
    %459 = arith.addf %452, %458 : vector<7x128xf32>
    %460 = vector.extract_strided_slice %45 {offsets = [5, 0, 0], sizes = [1, 7, 128], strides = [1, 1, 1]} : vector<8x8x128xf32> to vector<1x7x128xf32>
    %461 = vector.shape_cast %460 : vector<1x7x128xf32> to vector<7x128xf32>
    %462 = vector.extract_strided_slice %2 {offsets = [1, 1, 0], sizes = [1, 1, 128], strides = [1, 1, 1]} : vector<3x3x128xf32> to vector<1x1x128xf32>
    %463 = vector.shape_cast %462 : vector<1x1x128xf32> to vector<1x128xf32>
    %464 = vector.broadcast %463 : vector<1x128xf32> to vector<7x128xf32>
    %465 = arith.mulf %461, %464 : vector<7x128xf32>
    %466 = arith.addf %459, %465 : vector<7x128xf32>
    %467 = vector.extract_strided_slice %35 {offsets = [5, 1, 0], sizes = [1, 7, 128], strides = [1, 1, 1]} : vector<8x8x128xf32> to vector<1x7x128xf32>
    %468 = vector.shape_cast %467 : vector<1x7x128xf32> to vector<7x128xf32>
    %469 = vector.extract_strided_slice %2 {offsets = [1, 2, 0], sizes = [1, 1, 128], strides = [1, 1, 1]} : vector<3x3x128xf32> to vector<1x1x128xf32>
    %470 = vector.shape_cast %469 : vector<1x1x128xf32> to vector<1x128xf32>
    %471 = vector.broadcast %470 : vector<1x128xf32> to vector<7x128xf32>
    %472 = arith.mulf %468, %471 : vector<7x128xf32>
    %473 = arith.addf %466, %472 : vector<7x128xf32>
    %474 = vector.extract_strided_slice %15 {offsets = [6, 0, 0], sizes = [1, 7, 128], strides = [1, 1, 1]} : vector<8x8x128xf32> to vector<1x7x128xf32>
    %475 = vector.shape_cast %474 : vector<1x7x128xf32> to vector<7x128xf32>
    %476 = vector.extract_strided_slice %2 {offsets = [2, 0, 0], sizes = [1, 1, 128], strides = [1, 1, 1]} : vector<3x3x128xf32> to vector<1x1x128xf32>
    %477 = vector.shape_cast %476 : vector<1x1x128xf32> to vector<1x128xf32>
    %478 = vector.broadcast %477 : vector<1x128xf32> to vector<7x128xf32>
    %479 = arith.mulf %475, %478 : vector<7x128xf32>
    %480 = arith.addf %473, %479 : vector<7x128xf32>
    %481 = vector.extract_strided_slice %25 {offsets = [6, 0, 0], sizes = [1, 7, 128], strides = [1, 1, 1]} : vector<8x8x128xf32> to vector<1x7x128xf32>
    %482 = vector.shape_cast %481 : vector<1x7x128xf32> to vector<7x128xf32>
    %483 = vector.extract_strided_slice %2 {offsets = [2, 1, 0], sizes = [1, 1, 128], strides = [1, 1, 1]} : vector<3x3x128xf32> to vector<1x1x128xf32>
    %484 = vector.shape_cast %483 : vector<1x1x128xf32> to vector<1x128xf32>
    %485 = vector.broadcast %484 : vector<1x128xf32> to vector<7x128xf32>
    %486 = arith.mulf %482, %485 : vector<7x128xf32>
    %487 = arith.addf %480, %486 : vector<7x128xf32>
    %488 = vector.extract_strided_slice %15 {offsets = [6, 1, 0], sizes = [1, 7, 128], strides = [1, 1, 1]} : vector<8x8x128xf32> to vector<1x7x128xf32>
    %489 = vector.shape_cast %488 : vector<1x7x128xf32> to vector<7x128xf32>
    %490 = vector.extract_strided_slice %2 {offsets = [2, 2, 0], sizes = [1, 1, 128], strides = [1, 1, 1]} : vector<3x3x128xf32> to vector<1x1x128xf32>
    %491 = vector.shape_cast %490 : vector<1x1x128xf32> to vector<1x128xf32>
    %492 = vector.broadcast %491 : vector<1x128xf32> to vector<7x128xf32>
    %493 = arith.mulf %489, %492 : vector<7x128xf32>
    %494 = arith.addf %487, %493 : vector<7x128xf32>
    %495 = vector.broadcast %3 : vector<1x128xf32> to vector<7x128xf32>
    %496 = arith.addf %494, %495 : vector<7x128xf32>
    %cst_80 = arith.constant 0.000000e+00 : f32
    %cst_81 = arith.constant 6.000000e+00 : f32
    %497 = vector.broadcast %cst_80 : f32 to vector<7x128xf32>
    %498 = arith.maximumf %497, %496 : vector<7x128xf32>
    %499 = vector.broadcast %cst_81 : f32 to vector<7x128xf32>
    %500 = arith.minimumf %499, %498 : vector<7x128xf32>
    %501 = arith.truncf %500 : vector<7x128xf32> to vector<7x128xbf16>
    %cst_82 = arith.constant dense<0.000000e+00> : vector<7x128xf32>
    %502 = tpu.matmul %501, %4, %cst_82 {dimension_numbers = #tpu.dot_dimension_numbers<[1], [0], [0], [1], [0, 0, 1, 1], [], []>} : vector<7x128xbf16>, vector<128x128xbf16>, vector<7x128xf32> -> vector<7x128xf32>
    %503 = vector.broadcast %5 : vector<1x128xf32> to vector<7x128xf32>
    %504 = arith.addf %502, %503 : vector<7x128xf32>
    %c0_83 = arith.constant 0 : index
    %c5 = arith.constant 5 : index
    %c0_84 = arith.constant 0 : index
    %c0_85 = arith.constant 0 : index
    %505 = vector.load %arg8[%c0_83, %c5, %c0_84, %c0_85] : memref<1x7x7x128xf32, #tpu.memory_space<vmem>>, vector<1x1x7x128xf32>
    %506 = vector.shape_cast %505 : vector<1x1x7x128xf32> to vector<7x128xf32>
    %507 = vector.shape_cast %504 : vector<7x128xf32> to vector<1x1x7x128xf32>
    tpu.vector_store %arg8[%c0_83, %c5, %c0_84, %c0_85], %507 {strides = array<i32>} : memref<1x7x7x128xf32, #tpu.memory_space<vmem>>, vector<1x1x7x128xf32>,
    %cst_86 = arith.constant 0.000000e+00 : f32
    %508 = vector.broadcast %cst_86 : f32 to vector<7x128xf32>
    %509 = vector.extract_strided_slice %15 {offsets = [6, 0, 0], sizes = [1, 7, 128], strides = [1, 1, 1]} : vector<8x8x128xf32> to vector<1x7x128xf32>
    %510 = vector.shape_cast %509 : vector<1x7x128xf32> to vector<7x128xf32>
    %511 = vector.extract_strided_slice %2 {offsets = [0, 0, 0], sizes = [1, 1, 128], strides = [1, 1, 1]} : vector<3x3x128xf32> to vector<1x1x128xf32>
    %512 = vector.shape_cast %511 : vector<1x1x128xf32> to vector<1x128xf32>
    %513 = vector.broadcast %512 : vector<1x128xf32> to vector<7x128xf32>
    %514 = arith.mulf %510, %513 : vector<7x128xf32>
    %515 = arith.addf %508, %514 : vector<7x128xf32>
    %516 = vector.extract_strided_slice %25 {offsets = [6, 0, 0], sizes = [1, 7, 128], strides = [1, 1, 1]} : vector<8x8x128xf32> to vector<1x7x128xf32>
    %517 = vector.shape_cast %516 : vector<1x7x128xf32> to vector<7x128xf32>
    %518 = vector.extract_strided_slice %2 {offsets = [0, 1, 0], sizes = [1, 1, 128], strides = [1, 1, 1]} : vector<3x3x128xf32> to vector<1x1x128xf32>
    %519 = vector.shape_cast %518 : vector<1x1x128xf32> to vector<1x128xf32>
    %520 = vector.broadcast %519 : vector<1x128xf32> to vector<7x128xf32>
    %521 = arith.mulf %517, %520 : vector<7x128xf32>
    %522 = arith.addf %515, %521 : vector<7x128xf32>
    %523 = vector.extract_strided_slice %15 {offsets = [6, 1, 0], sizes = [1, 7, 128], strides = [1, 1, 1]} : vector<8x8x128xf32> to vector<1x7x128xf32>
    %524 = vector.shape_cast %523 : vector<1x7x128xf32> to vector<7x128xf32>
    %525 = vector.extract_strided_slice %2 {offsets = [0, 2, 0], sizes = [1, 1, 128], strides = [1, 1, 1]} : vector<3x3x128xf32> to vector<1x1x128xf32>
    %526 = vector.shape_cast %525 : vector<1x1x128xf32> to vector<1x128xf32>
    %527 = vector.broadcast %526 : vector<1x128xf32> to vector<7x128xf32>
    %528 = arith.mulf %524, %527 : vector<7x128xf32>
    %529 = arith.addf %522, %528 : vector<7x128xf32>
    %530 = vector.extract_strided_slice %35 {offsets = [6, 0, 0], sizes = [1, 7, 128], strides = [1, 1, 1]} : vector<8x8x128xf32> to vector<1x7x128xf32>
    %531 = vector.shape_cast %530 : vector<1x7x128xf32> to vector<7x128xf32>
    %532 = vector.extract_strided_slice %2 {offsets = [1, 0, 0], sizes = [1, 1, 128], strides = [1, 1, 1]} : vector<3x3x128xf32> to vector<1x1x128xf32>
    %533 = vector.shape_cast %532 : vector<1x1x128xf32> to vector<1x128xf32>
    %534 = vector.broadcast %533 : vector<1x128xf32> to vector<7x128xf32>
    %535 = arith.mulf %531, %534 : vector<7x128xf32>
    %536 = arith.addf %529, %535 : vector<7x128xf32>
    %537 = vector.extract_strided_slice %45 {offsets = [6, 0, 0], sizes = [1, 7, 128], strides = [1, 1, 1]} : vector<8x8x128xf32> to vector<1x7x128xf32>
    %538 = vector.shape_cast %537 : vector<1x7x128xf32> to vector<7x128xf32>
    %539 = vector.extract_strided_slice %2 {offsets = [1, 1, 0], sizes = [1, 1, 128], strides = [1, 1, 1]} : vector<3x3x128xf32> to vector<1x1x128xf32>
    %540 = vector.shape_cast %539 : vector<1x1x128xf32> to vector<1x128xf32>
    %541 = vector.broadcast %540 : vector<1x128xf32> to vector<7x128xf32>
    %542 = arith.mulf %538, %541 : vector<7x128xf32>
    %543 = arith.addf %536, %542 : vector<7x128xf32>
    %544 = vector.extract_strided_slice %35 {offsets = [6, 1, 0], sizes = [1, 7, 128], strides = [1, 1, 1]} : vector<8x8x128xf32> to vector<1x7x128xf32>
    %545 = vector.shape_cast %544 : vector<1x7x128xf32> to vector<7x128xf32>
    %546 = vector.extract_strided_slice %2 {offsets = [1, 2, 0], sizes = [1, 1, 128], strides = [1, 1, 1]} : vector<3x3x128xf32> to vector<1x1x128xf32>
    %547 = vector.shape_cast %546 : vector<1x1x128xf32> to vector<1x128xf32>
    %548 = vector.broadcast %547 : vector<1x128xf32> to vector<7x128xf32>
    %549 = arith.mulf %545, %548 : vector<7x128xf32>
    %550 = arith.addf %543, %549 : vector<7x128xf32>
    %551 = vector.extract_strided_slice %15 {offsets = [7, 0, 0], sizes = [1, 7, 128], strides = [1, 1, 1]} : vector<8x8x128xf32> to vector<1x7x128xf32>
    %552 = vector.shape_cast %551 : vector<1x7x128xf32> to vector<7x128xf32>
    %553 = vector.extract_strided_slice %2 {offsets = [2, 0, 0], sizes = [1, 1, 128], strides = [1, 1, 1]} : vector<3x3x128xf32> to vector<1x1x128xf32>
    %554 = vector.shape_cast %553 : vector<1x1x128xf32> to vector<1x128xf32>
    %555 = vector.broadcast %554 : vector<1x128xf32> to vector<7x128xf32>
    %556 = arith.mulf %552, %555 : vector<7x128xf32>
    %557 = arith.addf %550, %556 : vector<7x128xf32>
    %558 = vector.extract_strided_slice %25 {offsets = [7, 0, 0], sizes = [1, 7, 128], strides = [1, 1, 1]} : vector<8x8x128xf32> to vector<1x7x128xf32>
    %559 = vector.shape_cast %558 : vector<1x7x128xf32> to vector<7x128xf32>
    %560 = vector.extract_strided_slice %2 {offsets = [2, 1, 0], sizes = [1, 1, 128], strides = [1, 1, 1]} : vector<3x3x128xf32> to vector<1x1x128xf32>
    %561 = vector.shape_cast %560 : vector<1x1x128xf32> to vector<1x128xf32>
    %562 = vector.broadcast %561 : vector<1x128xf32> to vector<7x128xf32>
    %563 = arith.mulf %559, %562 : vector<7x128xf32>
    %564 = arith.addf %557, %563 : vector<7x128xf32>
    %565 = vector.extract_strided_slice %15 {offsets = [7, 1, 0], sizes = [1, 7, 128], strides = [1, 1, 1]} : vector<8x8x128xf32> to vector<1x7x128xf32>
    %566 = vector.shape_cast %565 : vector<1x7x128xf32> to vector<7x128xf32>
    %567 = vector.extract_strided_slice %2 {offsets = [2, 2, 0], sizes = [1, 1, 128], strides = [1, 1, 1]} : vector<3x3x128xf32> to vector<1x1x128xf32>
    %568 = vector.shape_cast %567 : vector<1x1x128xf32> to vector<1x128xf32>
    %569 = vector.broadcast %568 : vector<1x128xf32> to vector<7x128xf32>
    %570 = arith.mulf %566, %569 : vector<7x128xf32>
    %571 = arith.addf %564, %570 : vector<7x128xf32>
    %572 = vector.broadcast %3 : vector<1x128xf32> to vector<7x128xf32>
    %573 = arith.addf %571, %572 : vector<7x128xf32>
    %cst_87 = arith.constant 0.000000e+00 : f32
    %cst_88 = arith.constant 6.000000e+00 : f32
    %574 = vector.broadcast %cst_87 : f32 to vector<7x128xf32>
    %575 = arith.maximumf %574, %573 : vector<7x128xf32>
    %576 = vector.broadcast %cst_88 : f32 to vector<7x128xf32>
    %577 = arith.minimumf %576, %575 : vector<7x128xf32>
    %578 = arith.truncf %577 : vector<7x128xf32> to vector<7x128xbf16>
    %cst_89 = arith.constant dense<0.000000e+00> : vector<7x128xf32>
    %579 = tpu.matmul %578, %4, %cst_89 {dimension_numbers = #tpu.dot_dimension_numbers<[1], [0], [0], [1], [0, 0, 1, 1], [], []>} : vector<7x128xbf16>, vector<128x128xbf16>, vector<7x128xf32> -> vector<7x128xf32>
    %580 = vector.broadcast %5 : vector<1x128xf32> to vector<7x128xf32>
    %581 = arith.addf %579, %580 : vector<7x128xf32>
    %c0_90 = arith.constant 0 : index
    %c6 = arith.constant 6 : index
    %c0_91 = arith.constant 0 : index
    %c0_92 = arith.constant 0 : index
    %582 = vector.load %arg8[%c0_90, %c6, %c0_91, %c0_92] : memref<1x7x7x128xf32, #tpu.memory_space<vmem>>, vector<1x1x7x128xf32>
    %583 = vector.shape_cast %582 : vector<1x1x7x128xf32> to vector<7x128xf32>
    %584 = vector.shape_cast %581 : vector<7x128xf32> to vector<1x1x7x128xf32>
    tpu.vector_store %arg8[%c0_90, %c6, %c0_91, %c0_92], %584 {strides = array<i32>} : memref<1x7x7x128xf32, #tpu.memory_space<vmem>>, vector<1x1x7x128xf32>,
    return
  }
  func.func @transform_0(%arg0: i32) -> (i32, i32, i32, i32, i32) {
    %c0_i32 = arith.constant 0 : i32
    %c0_i32_0 = arith.constant 0 : i32
    %c0_i32_1 = arith.constant 0 : i32
    %c0_i32_2 = arith.constant 0 : i32
    %c0_i32_3 = arith.constant 0 : i32
    return %arg0, %c0_i32, %c0_i32_0, %c0_i32_1, %c0_i32_2 : i32, i32, i32, i32, i32
  }
  func.func @transform_1(%arg0: i32) -> (i32, i32) {
    %c0_i32 = arith.constant 0 : i32
    %c0_i32_0 = arith.constant 0 : i32
    %c0_i32_1 = arith.constant 0 : i32
    return %c0_i32, %c0_i32_0 : i32, i32
  }
  func.func @transform_2(%arg0: i32) -> (i32, i32) {
    %c0_i32 = arith.constant 0 : i32
    %c0_i32_0 = arith.constant 0 : i32
    %c0_i32_1 = arith.constant 0 : i32
    return %c0_i32, %c0_i32_0 : i32, i32
  }
  func.func @transform_3(%arg0: i32) -> (i32, i32, i32) {
    %c0_i32 = arith.constant 0 : i32
    %c0_i32_0 = arith.constant 0 : i32
    %c0_i32_1 = arith.constant 0 : i32
    %c0_i32_2 = arith.constant 0 : i32
    return %c0_i32, %c0_i32_0, %c0_i32_1 : i32, i32, i32
  }
  func.func @transform_4(%arg0: i32) -> (i32, i32) {
    %c0_i32 = arith.constant 0 : i32
    %c0_i32_0 = arith.constant 0 : i32
    %c0_i32_1 = arith.constant 0 : i32
    return %c0_i32, %c0_i32_0 : i32, i32
  }
  func.func @transform_5(%arg0: i32) -> (i32, i32) {
    %c0_i32 = arith.constant 0 : i32
    %c0_i32_0 = arith.constant 0 : i32
    %c0_i32_1 = arith.constant 0 : i32
    return %c0_i32, %c0_i32_0 : i32, i32
  }
  func.func @transform_6(%arg0: i32) -> (i32, i32) {
    %c0_i32 = arith.constant 0 : i32
    %c0_i32_0 = arith.constant 0 : i32
    %c0_i32_1 = arith.constant 0 : i32
    return %c0_i32, %c0_i32_0 : i32, i32
  }
  func.func @transform_7(%arg0: i32) -> (i32, i32, i32, i32) {
    %c0_i32 = arith.constant 0 : i32
    %c0_i32_0 = arith.constant 0 : i32
    %c0_i32_1 = arith.constant 0 : i32
    %c0_i32_2 = arith.constant 0 : i32
    return %arg0, %c0_i32, %c0_i32_0, %c0_i32_1 : i32, i32, i32, i32
  }
}

</mosaic_0001>

<llo_original>
// kernel: a_call__.1
$region0: #{a_call__.1}
  #allocation0 [shape = 'u32[]', space=smem, size = 0x4, offset = 0x4, fixed_abs, tag = 'smem constant byte address 0x4 - core index']
  #allocation1 [shape = 'u32[144,128]{1,0:T(1,128)}', space=vmem, size = 0x12000, scoped, tag = 'internal scratch']
  %s0 = inlined_call_operand.vmem [shape: bf16[2,2,2,64,128], index: 0, kind: input, shape index: {}]
  %s1 = inlined_call_operand.vmem [shape: bf16[128,128], index: 1, kind: input, shape index: {}]
  %s2 = inlined_call_operand.vmem [shape: f32[1,128], index: 2, kind: input, shape index: {}]
  %s3 = inlined_call_operand.vmem [shape: f32[3,3,128], index: 3, kind: input, shape index: {}]
  %s4 = inlined_call_operand.vmem [shape: f32[1,128], index: 4, kind: input, shape index: {}]
  %s5 = inlined_call_operand.vmem [shape: bf16[128,128], index: 5, kind: input, shape index: {}]
  %s6 = inlined_call_operand.vmem [shape: f32[1,128], index: 6, kind: input, shape index: {}]
  %s7 = inlined_call_operand.vmem [shape: f32[2,7,7,128], index: 7, kind: output, shape index: {}]
  %s8 = sld [smem:[#allocation0]]
  $region61: #{a_call__.1} parent=0
    _
  %s10 = ssub.s32 1, %s8
  %s11 = scalar_select 0, %s10, %s8
  loop: start=0, step=1, limit=4
  $region2: #{a_call__.1} parent=0 // loop_pre_header
    _
  $region3: #{a_call__.1} parent=0 // loop_header
    %s13 = sphi 0, %s17
    %p14 = scmp.ge.s32.totalorder %s13, 4
    %s23 = sphi 0, %s25
    %s26 = sphi 0, %s23
    %s27 = sphi 0, %s26
    %s43 = sphi 0, %s27
    %s47 = sphi 0, %s47
    %s49 = sphi 0, %s47
    %s50 = sphi 0, %s49
    %s64 = sphi 0, %s50
    %s68 = sphi 0, %s68
    %s70 = sphi 0, %s68
    %s71 = sphi 0, %s70
    %s85 = sphi 0, %s71
    %s89 = sphi 0, %s89
    %s91 = sphi 0, %s89
    %s92 = sphi 0, %s91
    %s106 = sphi 0, %s92
    %s110 = sphi 0, %s110
    %s112 = sphi 0, %s110
    %s113 = sphi 0, %s112
    %s127 = sphi 0, %s113
    %s131 = sphi 0, %s131
    %s133 = sphi 0, %s131
    %s134 = sphi 0, %s133
    %s148 = sphi 0, %s134
    %s152 = sphi 0, %s152
    %s154 = sphi 0, %s152
    %s155 = sphi 0, %s154
    %s169 = sphi 0, %s155
    %s175 = sphi 0, %s177
    %s178 = sphi 0, %s175
    %s179 = sphi 0, %s178
    %s195 = sphi 0, %s179
  $region4: #{a_call__.1} parent=0 // loop_header_branch
    %16 = sbr.rel (%p14) target = $region8
  $region5: #{a_call__.1} parent=0 // loop_body
    %s18 = ssub.s32 %s13, 1
    %s19 = ssub.s32 %s13, 2
    %s20 = sadd.s32 %s13, 1
    %s21 = ssub.s32 %s13, %s20
    %p22 = scmp.eq.s32.totalorder %s21, 0
    %s24 = sadd.s32 %s23, 1
    %s25 = scalar_select %p22, %s23, %s24
    %p28 = pneg %p22
    %p29 = scmp.eq.s32.totalorder %s13, 1
    %p30 = por %p28, %p29
    %p31 = scmp.ne.s32.totalorder %s23, %s26
    %p32 = scmp.eq.s32.totalorder %s13, 0
    %p33 = por %p31, %p32
    %p34 = scmp.ne.s32.totalorder %s23, %s26
    %p35 = scmp.eq.s32.totalorder %s18, 1
    %p36 = por %p34, %p35
    %p37 = scmp.ne.s32.totalorder %s26, %s27
    %p38 = scmp.eq.s32.totalorder %s18, 0
    %p39 = por %p37, %p38
    %p40 = scmp.ne.s32.totalorder %s26, %s27
    %p41 = scmp.eq.s32.totalorder %s19, 1
    %p42 = por %p40, %p41
    %p44 = scmp.ne.s32.totalorder %s27, %s43
    %p45 = scmp.eq.s32.totalorder %s19, 0
    %p46 = por %p44, %p45
    %s48 = sadd.s32 %s47, 1
    %p51 = scmp.eq.s32.totalorder %s13, 1
    %p52 = scmp.ne.s32.totalorder %s47, %s49
    %p53 = scmp.eq.s32.totalorder %s13, 0
    %p54 = por %p52, %p53
    %p55 = scmp.ne.s32.totalorder %s47, %s49
    %p56 = scmp.eq.s32.totalorder %s18, 1
    %p57 = por %p55, %p56
    %p58 = scmp.ne.s32.totalorder %s49, %s50
    %p59 = scmp.eq.s32.totalorder %s18, 0
    %p60 = por %p58, %p59
    %p61 = scmp.ne.s32.totalorder %s49, %s50
    %p62 = scmp.eq.s32.totalorder %s19, 1
    %p63 = por %p61, %p62
    %p65 = scmp.ne.s32.totalorder %s50, %s64
    %p66 = scmp.eq.s32.totalorder %s19, 0
    %p67 = por %p65, %p66
    %s69 = sadd.s32 %s68, 1
    %p72 = scmp.eq.s32.totalorder %s13, 1
    %p73 = scmp.ne.s32.totalorder %s68, %s70
    %p74 = scmp.eq.s32.totalorder %s13, 0
    %p75 = por %p73, %p74
    %p76 = scmp.ne.s32.totalorder %s68, %s70
    %p77 = scmp.eq.s32.totalorder %s18, 1
    %p78 = por %p76, %p77
    %p79 = scmp.ne.s32.totalorder %s70, %s71
    %p80 = scmp.eq.s32.totalorder %s18, 0
    %p81 = por %p79, %p80
    %p82 = scmp.ne.s32.totalorder %s70, %s71
    %p83 = scmp.eq.s32.totalorder %s19, 1
    %p84 = por %p82, %p83
    %p86 = scmp.ne.s32.totalorder %s71, %s85
    %p87 = scmp.eq.s32.totalorder %s19, 0
    %p88 = por %p86, %p87
    %s90 = sadd.s32 %s89, 1
    %p93 = scmp.eq.s32.totalorder %s13, 1
    %p94 = scmp.ne.s32.totalorder %s89, %s91
    %p95 = scmp.eq.s32.totalorder %s13, 0
    %p96 = por %p94, %p95
    %p97 = scmp.ne.s32.totalorder %s89, %s91
    %p98 = scmp.eq.s32.totalorder %s18, 1
    %p99 = por %p97, %p98
    %p100 = scmp.ne.s32.totalorder %s91, %s92
    %p101 = scmp.eq.s32.totalorder %s18, 0
    %p102 = por %p100, %p101
    %p103 = scmp.ne.s32.totalorder %s91, %s92
    %p104 = scmp.eq.s32.totalorder %s19, 1
    %p105 = por %p103, %p104
    %p107 = scmp.ne.s32.totalorder %s92, %s106
    %p108 = scmp.eq.s32.totalorder %s19, 0
    %p109 = por %p107, %p108
    %s111 = sadd.s32 %s110, 1
    %p114 = scmp.eq.s32.totalorder %s13, 1
    %p115 = scmp.ne.s32.totalorder %s110, %s112
    %p116 = scmp.eq.s32.totalorder %s13, 0
    %p117 = por %p115, %p116
    %p118 = scmp.ne.s32.totalorder %s110, %s112
    %p119 = scmp.eq.s32.totalorder %s18, 1
    %p120 = por %p118, %p119
    %p121 = scmp.ne.s32.totalorder %s112, %s113
    %p122 = scmp.eq.s32.totalorder %s18, 0
    %p123 = por %p121, %p122
    %p124 = scmp.ne.s32.totalorder %s112, %s113
    %p125 = scmp.eq.s32.totalorder %s19, 1
    %p126 = por %p124, %p125
    %p128 = scmp.ne.s32.totalorder %s113, %s127
    %p129 = scmp.eq.s32.totalorder %s19, 0
    %p130 = por %p128, %p129
    %s132 = sadd.s32 %s131, 1
    %p135 = scmp.eq.s32.totalorder %s13, 1
    %p136 = scmp.ne.s32.totalorder %s131, %s133
    %p137 = scmp.eq.s32.totalorder %s13, 0
    %p138 = por %p136, %p137
    %p139 = scmp.ne.s32.totalorder %s131, %s133
    %p140 = scmp.eq.s32.totalorder %s18, 1
    %p141 = por %p139, %p140
    %p142 = scmp.ne.s32.totalorder %s133, %s134
    %p143 = scmp.eq.s32.totalorder %s18, 0
    %p144 = por %p142, %p143
    %p145 = scmp.ne.s32.totalorder %s133, %s134
    %p146 = scmp.eq.s32.totalorder %s19, 1
    %p147 = por %p145, %p146
    %p149 = scmp.ne.s32.totalorder %s134, %s148
    %p150 = scmp.eq.s32.totalorder %s19, 0
    %p151 = por %p149, %p150
    %s153 = sadd.s32 %s152, 1
    %p156 = scmp.eq.s32.totalorder %s13, 1
    %p157 = scmp.ne.s32.totalorder %s152, %s154
    %p158 = scmp.eq.s32.totalorder %s13, 0
    %p159 = por %p157, %p158
    %p160 = scmp.ne.s32.totalorder %s152, %s154
    %p161 = scmp.eq.s32.totalorder %s18, 1
    %p162 = por %p160, %p161
    %p163 = scmp.ne.s32.totalorder %s154, %s155
    %p164 = scmp.eq.s32.totalorder %s18, 0
    %p165 = por %p163, %p164
    %p166 = scmp.ne.s32.totalorder %s154, %s155
    %p167 = scmp.eq.s32.totalorder %s19, 1
    %p168 = por %p166, %p167
    %p170 = scmp.ne.s32.totalorder %s155, %s169
    %p171 = scmp.eq.s32.totalorder %s19, 0
    %p172 = por %p170, %p171
    %s173 = ssub.s32 %s13, %s20
    %p174 = scmp.eq.s32.totalorder %s173, 0
    %s176 = sadd.s32 %s175, 1
    %s177 = scalar_select %p174, %s175, %s176
    %p180 = pneg %p174
    %p181 = scmp.eq.s32.totalorder %s13, 1
    %p182 = por %p180, %p181
    %p183 = scmp.ne.s32.totalorder %s175, %s178
    %p184 = scmp.eq.s32.totalorder %s13, 0
    %p185 = por %p183, %p184
    %p186 = scmp.ne.s32.totalorder %s175, %s178
    %p187 = scmp.eq.s32.totalorder %s18, 1
    %p188 = por %p186, %p187
    %p189 = scmp.ne.s32.totalorder %s178, %s179
    %p190 = scmp.eq.s32.totalorder %s18, 0
    %p191 = por %p189, %p190
    %p192 = scmp.ne.s32.totalorder %s178, %s179
    %p193 = scmp.eq.s32.totalorder %s19, 1
    %p194 = por %p192, %p193
    %p196 = scmp.ne.s32.totalorder %s179, %s195
    %p197 = scmp.eq.s32.totalorder %s19, 0
    %p198 = por %p196, %p197
    %p199 = scmp.le.s32.totalorder 1, %s13
    %p200 = scmp.lt.s32.totalorder %s13, 3
    %p201 = pnand %p199, %p200
    %p202 = pneg %p201
    // Predicated region
    $region9: #{a_call__.1} parent=5 // pred_check
      _
    $region10: #{a_call__.1} parent=5 // pred_check_branch
      %204 = sbr.rel (%p201) target = $region12
    $region11: #{a_call__.1} parent=5 // pred_region
      %s205 = ssub.s32 %s13, 1
      // Predicated region
      $region13: #{a_call__.1} parent=11 // pred_check
        %p206 = pneg %p60
      $region14: #{a_call__.1} parent=11 // pred_check_branch
        %208 = sbr.rel (%p206) target = $region16
      $region15: #{a_call__.1} parent=11 // pred_region
        _
      $region16: #{a_call__.1} parent=11 // pred_fallthru
        _
      // Predicated region
      $region17: #{a_call__.1} parent=11 // pred_check
        %p209 = pneg %p81
      $region18: #{a_call__.1} parent=11 // pred_check_branch
        %211 = sbr.rel (%p209) target = $region20
      $region19: #{a_call__.1} parent=11 // pred_region
        _
      $region20: #{a_call__.1} parent=11 // pred_fallthru
        _
      // Predicated region
      $region21: #{a_call__.1} parent=11 // pred_check
        %p212 = pneg %p102
      $region22: #{a_call__.1} parent=11 // pred_check_branch
        %214 = sbr.rel (%p212) target = $region24
      $region23: #{a_call__.1} parent=11 // pred_region
        _
      $region24: #{a_call__.1} parent=11 // pred_fallthru
        _
      // Predicated region
      $region25: #{a_call__.1} parent=11 // pred_check
        %p215 = pneg %p123
      $region26: #{a_call__.1} parent=11 // pred_check_branch
        %217 = sbr.rel (%p215) target = $region28
      $region27: #{a_call__.1} parent=11 // pred_region
        _
      $region28: #{a_call__.1} parent=11 // pred_fallthru
        _
      // Predicated region
      $region29: #{a_call__.1} parent=11 // pred_check
        %p218 = pneg %p144
      $region30: #{a_call__.1} parent=11 // pred_check_branch
        %220 = sbr.rel (%p218) target = $region32
      $region31: #{a_call__.1} parent=11 // pred_region
        _
      $region32: #{a_call__.1} parent=11 // pred_fallthru
        _
      // Predicated region
      $region33: #{a_call__.1} parent=11 // pred_check
        %p221 = pneg %p165
      $region34: #{a_call__.1} parent=11 // pred_check_branch
        %223 = sbr.rel (%p221) target = $region36
      $region35: #{a_call__.1} parent=11 // pred_region
        _
      $region36: #{a_call__.1} parent=11 // pred_fallthru
        _
    $region12: #{a_call__.1} parent=5 // pred_fallthru
      _
    %p224 = scmp.lt.s32.totalorder %s13, 2
    // Predicated region
    $region37: #{a_call__.1} parent=5 // pred_check
      %p225 = pneg %p224
    $region38: #{a_call__.1} parent=5 // pred_check_branch
      %227 = sbr.rel (%p225) target = $region40
    $region39: #{a_call__.1} parent=5 // pred_region
      // Predicated region
      $region41: #{a_call__.1} parent=39 // pred_check
        %p228 = pneg %p33
      $region42: #{a_call__.1} parent=39 // pred_check_branch
        %230 = sbr.rel (%p228) target = $region44
      $region43: #{a_call__.1} parent=39 // pred_region
        %p231 = scmp.lt.s32.totalorder %s13, 1
        %s232 = scalar_select %p231, %s13, 1
        %s233 = smul.addr %s232, 32
        %s234 = smul.addr %s233, 4
        %s235 = scalar_lea.vmem %s0, %s234
      $region44: #{a_call__.1} parent=39 // pred_fallthru
        _
    $region40: #{a_call__.1} parent=5 // pred_fallthru
      _
    %p236 = scmp.le.s32.totalorder 1, %s13
    %p237 = scmp.lt.s32.totalorder %s13, 3
    %p238 = pnand %p236, %p237
    %p239 = pneg %p238
    // Predicated region
    $region45: #{a_call__.1} parent=5 // pred_check
      _
    $region46: #{a_call__.1} parent=5 // pred_check_branch
      %241 = sbr.rel (%p238) target = $region48
    $region47: #{a_call__.1} parent=5 // pred_region
      %s242 = ssub.s32 %s13, 1
      %p243 = scmp.lt.s32.totalorder %s18, 1
      %s244 = scalar_select %p243, %s18, 1
      %s245 = smul.addr %s244, 32
      %s246 = smul.addr %s245, 4
      %s247 = scalar_lea.vmem %s0, %s246
      %p248 = pneg %p39
      %p249 = pneg %p36
      %p250 = pneg %p60
      %p251 = pneg %p57
      %p252 = pneg %p81
      %p253 = pneg %p78
      %p254 = pneg %p102
      %p255 = pneg %p99
      %p256 = pneg %p123
      %p257 = pneg %p120
      %p258 = pneg %p144
      %p259 = pneg %p141
      %p260 = pneg %p165
      %p261 = pneg %p162
      %p262 = pneg %p191
      %p263 = pneg %p188
      %p264 = scmp.lt.s32.totalorder %s18, 1
      %s265 = scalar_select %p264, %s18, 1
      %s266 = smul.addr %s265, 7
      %s267 = smul.addr %s266, 8
      %s268 = scalar_lea.vmem %s7, %s267
      %p269 = scmp.lt.s32.totalorder %s18, 1
      %s270 = scalar_select %p269, %s18, 1
      %s271 = smul.addr %s270, 32
      %s272 = smul.addr %s271, 4
      %s273 = scalar_lea.vmem %s0, %s272
      %p274 = scmp.lt.s32.totalorder %s18, 1
      %s275 = scalar_select %p274, %s18, 1
      %s276 = smul.addr %s275, 7
      %s277 = smul.addr %s276, 8
      %s278 = scalar_lea.vmem %s7, %s277
      %v280 = vld [vmem:[%s1] sm:$0xf]
      %v281 = vld [vmem:[%s1 + $0x4] sm:$0xf]
      %v282 = vld [vmem:[%s1 + $0x8] sm:$0xf]
      %v283 = vld [vmem:[%s1 + $0xc] sm:$0xf]
      %v284 = vld [vmem:[%s1 + $0x10] sm:$0xf]
      %v285 = vld [vmem:[%s1 + $0x14] sm:$0xf]
      %v286 = vld [vmem:[%s1 + $0x18] sm:$0xf]
      %v287 = vld [vmem:[%s1 + $0x1c] sm:$0xf]
      %v288 = vld [vmem:[%s1 + $0x20] sm:$0xf]
      %v289 = vld [vmem:[%s1 + $0x24] sm:$0xf]
      %v290 = vld [vmem:[%s1 + $0x28] sm:$0xf]
      %v291 = vld [vmem:[%s1 + $0x2c] sm:$0xf]
      %v292 = vld [vmem:[%s1 + $0x30] sm:$0xf]
      %v293 = vld [vmem:[%s1 + $0x34] sm:$0xf]
      %v294 = vld [vmem:[%s1 + $0x38] sm:$0xf]
      %v295 = vld [vmem:[%s1 + $0x3c] sm:$0xf]
      %v296 = vld [vmem:[%s2] sm:$0x1]
      %v297 = vld [vmem:[%s3] sm:$0x7]
      %v298 = vld [vmem:[%s3 + $0x4] sm:$0x7]
      %v299 = vld [vmem:[%s3 + $0x8] sm:$0x7]
      %v300 = vld [vmem:[%s4] sm:$0x1]
      %v301 = vld [vmem:[%s5] sm:$0xf]
      %v302 = vld [vmem:[%s5 + $0x4] sm:$0xf]
      %v303 = vld [vmem:[%s5 + $0x8] sm:$0xf]
      %v304 = vld [vmem:[%s5 + $0xc] sm:$0xf]
      %v305 = vld [vmem:[%s5 + $0x10] sm:$0xf]
      %v306 = vld [vmem:[%s5 + $0x14] sm:$0xf]
      %v307 = vld [vmem:[%s5 + $0x18] sm:$0xf]
      %v308 = vld [vmem:[%s5 + $0x1c] sm:$0xf]
      %v309 = vld [vmem:[%s5 + $0x20] sm:$0xf]
      %v310 = vld [vmem:[%s5 + $0x24] sm:$0xf]
      %v311 = vld [vmem:[%s5 + $0x28] sm:$0xf]
      %v312 = vld [vmem:[%s5 + $0x2c] sm:$0xf]
      %v313 = vld [vmem:[%s5 + $0x30] sm:$0xf]
      %v314 = vld [vmem:[%s5 + $0x34] sm:$0xf]
      %v315 = vld [vmem:[%s5 + $0x38] sm:$0xf]
      %v316 = vld [vmem:[%s5 + $0x3c] sm:$0xf]
      %v317 = vld [vmem:[%s6] sm:$0x1]
      %v318 = vld [vmem:[%s273] sm:$0xf]
      %v319 = vld [vmem:[%s273 + $0x4] sm:$0xf]
      %v320 = vld [vmem:[%s273 + $0x8] sm:$0xf]
      %v321 = vld [vmem:[%s273 + $0xc] sm:$0xf]
      %v322 = vld [vmem:[%s273 + $0x10] sm:$0xf]
      %v323 = vld [vmem:[%s273 + $0x14] sm:$0xf]
      %v324 = vld [vmem:[%s273 + $0x18] sm:$0xf]
      %v325 = vld [vmem:[%s273 + $0x1c] sm:$0xf]
      %v327 = vlaneseq
      %v328 = vshrl.u32 %v327, 7
      %v329 = vsub.s32 0, %v328
      %v330 = vrot.slane %v296, %v329
      %v340 = vunpack.c.l.b16 %v318
      %v341 = vunpack.c.l.b16 %v319
      %v342 = vunpack.c.l.b16 %v320
      %v343 = vunpack.c.l.b16 %v321
      %v344 = vunpack.c.l.b16 %v322
      %v345 = vunpack.c.l.b16 %v323
      %v346 = vunpack.c.l.b16 %v324
      %v347 = vunpack.c.l.b16 %v325
      %v348 = vpack.c.b16 %v341, %v340
      %v349 = vpack.c.b16 %v343, %v342
      %v350 = vpack.c.b16 %v345, %v344
      %v351 = vpack.c.b16 %v347, %v346
      %v372 = vunpack.c.l.b16 %v280
      %v373 = vunpack.c.l.b16 %v281
      %v374 = vunpack.c.l.b16 %v282
      %v375 = vunpack.c.l.b16 %v283
      %v376 = vunpack.c.l.b16 %v284
      %v377 = vunpack.c.l.b16 %v285
      %v378 = vunpack.c.l.b16 %v286
      %v379 = vunpack.c.l.b16 %v287
      %v380 = vunpack.c.l.b16 %v288
      %v381 = vunpack.c.l.b16 %v289
      %v382 = vunpack.c.l.b16 %v290
      %v383 = vunpack.c.l.b16 %v291
      %v384 = vunpack.c.l.b16 %v292
      %v385 = vunpack.c.l.b16 %v293
      %v386 = vunpack.c.l.b16 %v294
      %v387 = vunpack.c.l.b16 %v295
      %v388 = vpack.c.b16 %v373, %v372
      %v389 = vpack.c.b16 %v375, %v374
      %v390 = vpack.c.b16 %v377, %v376
      %v391 = vpack.c.b16 %v379, %v378
      %v392 = vpack.c.b16 %v381, %v380
      %v393 = vpack.c.b16 %v383, %v382
      %v394 = vpack.c.b16 %v385, %v384
      %v395 = vpack.c.b16 %v387, %v386
      %404 = vmatprep.subr.bf16.mxu0 0
      %405 = vmatpush1.bf16.msra.mxu0 %v388
      %406 = vmatprep.subr.bf16.mxu0 0
      %407 = vmatpush1.bf16.msra.mxu0 %v389
      %408 = vmatprep.subr.bf16.mxu0 0
      %409 = vmatpush1.bf16.msra.mxu0 %v390
      %410 = vmatprep.subr.bf16.mxu0 0
      %411 = vmatpush1.bf16.msra.mxu0 %v391
      %412 = vmatprep.subr.bf16.mxu0 0
      %413 = vmatpush1.bf16.msra.mxu0 %v392
      %414 = vmatprep.subr.bf16.mxu0 0
      %415 = vmatpush1.bf16.msra.mxu0 %v393
      %416 = vmatprep.subr.bf16.mxu0 0
      %417 = vmatpush1.bf16.msra.mxu0 %v394
      %418 = vmatprep.subr.bf16.mxu0 0
      %419 = vmatpush1.bf16.msra.mxu0 %v395
      %420 = vmatprep.subr.bf16.mxu0 0
      %421 = vmatpush1.bf16.msra.mxu0 0
      %422 = vmatprep.subr.bf16.mxu0 0
      %423 = vmatpush1.bf16.msra.mxu0 0
      %424 = vmatprep.subr.bf16.mxu0 0
      %425 = vmatpush1.bf16.msra.mxu0 0
      %426 = vmatprep.subr.bf16.mxu0 0
      %427 = vmatpush1.bf16.msra.mxu0 0
      %428 = vmatprep.subr.bf16.mxu0 0
      %429 = vmatpush1.bf16.msra.mxu0 0
      %430 = vmatprep.subr.bf16.mxu0 0
      %431 = vmatpush1.bf16.msra.mxu0 0
      %432 = vmatprep.subr.bf16.mxu0 0
      %433 = vmatpush1.bf16.msra.mxu0 0
      %434 = vmatprep.subr.bf16.mxu0 0
      %435 = vmatpush1.bf16.msra.mxu0 0
      %436 = vmatprep.mubr.bf16.mxu0 0
      %437 = vmatmul.mubr.bf16.gmra.mrb[0].mxu0 %v348
      %v438 = vpop.f32.mrb[0].mxu0
      %v439 = vadd.f32 %v330, %v438
      %v440 = vpop.f32.mrb[0].mxu0
      %v441 = vpop.f32.mrb[0].mxu0
      %v442 = vadd.f32 %v330, %v441
      %v443 = vpop.f32.mrb[0].mxu0
      %444 = vmatprep.mubr.bf16.mxu0 0
      %445 = vmatmul.mubr.bf16.gmra.mrb[0].mxu0 %v349
      %v446 = vpop.f32.mrb[0].mxu0
      %v447 = vadd.f32 %v330, %v446
      %v448 = vpop.f32.mrb[0].mxu0
      %v449 = vpop.f32.mrb[0].mxu0
      %v450 = vadd.f32 %v330, %v449
      %v451 = vpop.f32.mrb[0].mxu0
      %452 = vmatprep.mubr.bf16.mxu0 0
      %453 = vmatmul.mubr.bf16.gmra.mrb[0].mxu0 %v350
      %v454 = vpop.f32.mrb[0].mxu0
      %v455 = vadd.f32 %v330, %v454
      %v456 = vpop.f32.mrb[0].mxu0
      %v457 = vpop.f32.mrb[0].mxu0
      %v458 = vadd.f32 %v330, %v457
      %v459 = vpop.f32.mrb[0].mxu0
      %460 = vmatprep.mubr.bf16.mxu0 0
      %461 = vmatmul.mubr.bf16.gmra.mrb[0].mxu0 %v351
      %v462 = vpop.f32.mrb[0].mxu0
      %v463 = vadd.f32 %v330, %v462
      %v464 = vpop.f32.mrb[0].mxu0
      %v465 = vpop.f32.mrb[0].mxu0
      %v466 = vadd.f32 %v330, %v465
      %v467 = vpop.f32.mrb[0].mxu0
      %468 = vdwg.mxu0
      %v469 = vmax.f32 %v439, 0.0
      %v470 = vmax.f32 %v442, 0.0
      %v471 = vmax.f32 %v447, 0.0
      %v472 = vmax.f32 %v450, 0.0
      %v473 = vmax.f32 %v455, 0.0
      %v474 = vmax.f32 %v458, 0.0
      %v475 = vmax.f32 %v463, 0.0
      %v476 = vmax.f32 %v466, 0.0
      %v477 = vmin.f32 %v469, 6.0
      %v478 = vmin.f32 %v470, 6.0
      %v479 = vmin.f32 %v471, 6.0
      %v480 = vmin.f32 %v472, 6.0
      %v481 = vmin.f32 %v473, 6.0
      %v482 = vmin.f32 %v474, 6.0
      %v483 = vmin.f32 %v475, 6.0
      %v484 = vmin.f32 %v476, 6.0
      %s485 = scalar_lea.vmem %s273, 32
      %v486 = vld [vmem:[%s485] sm:$0xf]
      %v487 = vld [vmem:[%s485 + $0x4] sm:$0xf]
      %v488 = vld [vmem:[%s485 + $0x8] sm:$0xf]
      %v489 = vld [vmem:[%s485 + $0xc] sm:$0xf]
      %v490 = vld [vmem:[%s485 + $0x10] sm:$0xf]
      %v491 = vld [vmem:[%s485 + $0x14] sm:$0xf]
      %v492 = vld [vmem:[%s485 + $0x18] sm:$0xf]
      %v493 = vld [vmem:[%s485 + $0x1c] sm:$0xf]
      %v502 = vunpack.c.l.b16 %v486
      %v503 = vunpack.c.l.b16 %v487
      %v504 = vunpack.c.l.b16 %v488
      %v505 = vunpack.c.l.b16 %v489
      %v506 = vunpack.c.l.b16 %v490
      %v507 = vunpack.c.l.b16 %v491
      %v508 = vunpack.c.l.b16 %v492
      %v509 = vunpack.c.l.b16 %v493
      %v510 = vpack.c.b16 %v503, %v502
      %v511 = vpack.c.b16 %v505, %v504
      %v512 = vpack.c.b16 %v507, %v506
      %v513 = vpack.c.b16 %v509, %v508
      %518 = vmatprep.subr.bf16.mxu0 0
      %519 = vmatpush1.bf16.msra.mxu0 %v388
      %520 = vmatprep.subr.bf16.mxu0 0
      %521 = vmatpush1.bf16.msra.mxu0 %v389
      %522 = vmatprep.subr.bf16.mxu0 0
      %523 = vmatpush1.bf16.msra.mxu0 %v390
      %524 = vmatprep.subr.bf16.mxu0 0
      %525 = vmatpush1.bf16.msra.mxu0 %v391
      %526 = vmatprep.subr.bf16.mxu0 0
      %527 = vmatpush1.bf16.msra.mxu0 %v392
      %528 = vmatprep.subr.bf16.mxu0 0
      %529 = vmatpush1.bf16.msra.mxu0 %v393
      %530 = vmatprep.subr.bf16.mxu0 0
      %531 = vmatpush1.bf16.msra.mxu0 %v394
      %532 = vmatprep.subr.bf16.mxu0 0
      %533 = vmatpush1.bf16.msra.mxu0 %v395
      %534 = vmatprep.subr.bf16.mxu0 0
      %535 = vmatpush1.bf16.msra.mxu0 0
      %536 = vmatprep.subr.bf16.mxu0 0
      %537 = vmatpush1.bf16.msra.mxu0 0
      %538 = vmatprep.subr.bf16.mxu0 0
      %539 = vmatpush1.bf16.msra.mxu0 0
      %540 = vmatprep.subr.bf16.mxu0 0
      %541 = vmatpush1.bf16.msra.mxu0 0
      %542 = vmatprep.subr.bf16.mxu0 0
      %543 = vmatpush1.bf16.msra.mxu0 0
      %544 = vmatprep.subr.bf16.mxu0 0
      %545 = vmatpush1.bf16.msra.mxu0 0
      %546 = vmatprep.subr.bf16.mxu0 0
      %547 = vmatpush1.bf16.msra.mxu0 0
      %548 = vmatprep.subr.bf16.mxu0 0
      %549 = vmatpush1.bf16.msra.mxu0 0
      %550 = vmatprep.mubr.bf16.mxu0 0
      %551 = vmatmul.mubr.bf16.gmra.mrb[0].mxu0 %v510
      %v552 = vpop.f32.mrb[0].mxu0
      %v553 = vadd.f32 %v330, %v552
      %v554 = vpop.f32.mrb[0].mxu0
      %v555 = vpop.f32.mrb[0].mxu0
      %v556 = vadd.f32 %v330, %v555
      %v557 = vpop.f32.mrb[0].mxu0
      %558 = vmatprep.mubr.bf16.mxu0 0
      %559 = vmatmul.mubr.bf16.gmra.mrb[0].mxu0 %v511
      %v560 = vpop.f32.mrb[0].mxu0
      %v561 = vadd.f32 %v330, %v560
      %v562 = vpop.f32.mrb[0].mxu0
      %v563 = vpop.f32.mrb[0].mxu0
      %v564 = vadd.f32 %v330, %v563
      %v565 = vpop.f32.mrb[0].mxu0
      %566 = vmatprep.mubr.bf16.mxu0 0
      %567 = vmatmul.mubr.bf16.gmra.mrb[0].mxu0 %v512
      %v568 = vpop.f32.mrb[0].mxu0
      %v569 = vadd.f32 %v330, %v568
      %v570 = vpop.f32.mrb[0].mxu0
      %v571 = vpop.f32.mrb[0].mxu0
      %v572 = vadd.f32 %v330, %v571
      %v573 = vpop.f32.mrb[0].mxu0
      %574 = vmatprep.mubr.bf16.mxu0 0
      %575 = vmatmul.mubr.bf16.gmra.mrb[0].mxu0 %v513
      %v576 = vpop.f32.mrb[0].mxu0
      %v577 = vadd.f32 %v330, %v576
      %v578 = vpop.f32.mrb[0].mxu0
      %v579 = vpop.f32.mrb[0].mxu0
      %v580 = vadd.f32 %v330, %v579
      %v581 = vpop.f32.mrb[0].mxu0
      %582 = vdwg.mxu0
      %v583 = vmax.f32 %v553, 0.0
      %v584 = vmax.f32 %v556, 0.0
      %v585 = vmax.f32 %v561, 0.0
      %v586 = vmax.f32 %v564, 0.0
      %v587 = vmax.f32 %v569, 0.0
      %v588 = vmax.f32 %v572, 0.0
      %v589 = vmax.f32 %v577, 0.0
      %v590 = vmax.f32 %v580, 0.0
      %v591 = vmin.f32 %v583, 6.0
      %v592 = vmin.f32 %v584, 6.0
      %v593 = vmin.f32 %v585, 6.0
      %v594 = vmin.f32 %v586, 6.0
      %v595 = vmin.f32 %v587, 6.0
      %v596 = vmin.f32 %v588, 6.0
      %v597 = vmin.f32 %v589, 6.0
      %v598 = vmin.f32 %v590, 6.0
      %s599 = scalar_lea.vmem %s273, 64
      %v600 = vld [vmem:[%s599] sm:$0xf]
      %v601 = vld [vmem:[%s599 + $0x4] sm:$0xf]
      %v602 = vld [vmem:[%s599 + $0x8] sm:$0xf]
      %v603 = vld [vmem:[%s599 + $0xc] sm:$0xf]
      %v604 = vld [vmem:[%s599 + $0x10] sm:$0xf]
      %v605 = vld [vmem:[%s599 + $0x14] sm:$0xf]
      %v606 = vld [vmem:[%s599 + $0x18] sm:$0xf]
      %v607 = vld [vmem:[%s599 + $0x1c] sm:$0xf]
      %v616 = vunpack.c.l.b16 %v600
      %v617 = vunpack.c.l.b16 %v601
      %v618 = vunpack.c.l.b16 %v602
      %v619 = vunpack.c.l.b16 %v603
      %v620 = vunpack.c.l.b16 %v604
      %v621 = vunpack.c.l.b16 %v605
      %v622 = vunpack.c.l.b16 %v606
      %v623 = vunpack.c.l.b16 %v607
      %v624 = vpack.c.b16 %v617, %v616
      %v625 = vpack.c.b16 %v619, %v618
      %v626 = vpack.c.b16 %v621, %v620
      %v627 = vpack.c.b16 %v623, %v622
      %632 = vmatprep.subr.bf16.mxu0 0
      %633 = vmatpush1.bf16.msra.mxu0 %v388
      %634 = vmatprep.subr.bf16.mxu0 0
      %635 = vmatpush1.bf16.msra.mxu0 %v389
      %636 = vmatprep.subr.bf16.mxu0 0
      %637 = vmatpush1.bf16.msra.mxu0 %v390
      %638 = vmatprep.subr.bf16.mxu0 0
      %639 = vmatpush1.bf16.msra.mxu0 %v391
      %640 = vmatprep.subr.bf16.mxu0 0
      %641 = vmatpush1.bf16.msra.mxu0 %v392
      %642 = vmatprep.subr.bf16.mxu0 0
      %643 = vmatpush1.bf16.msra.mxu0 %v393
      %644 = vmatprep.subr.bf16.mxu0 0
      %645 = vmatpush1.bf16.msra.mxu0 %v394
      %646 = vmatprep.subr.bf16.mxu0 0
      %647 = vmatpush1.bf16.msra.mxu0 %v395
      %648 = vmatprep.subr.bf16.mxu0 0
      %649 = vmatpush1.bf16.msra.mxu0 0
      %650 = vmatprep.subr.bf16.mxu0 0
      %651 = vmatpush1.bf16.msra.mxu0 0
      %652 = vmatprep.subr.bf16.mxu0 0
      %653 = vmatpush1.bf16.msra.mxu0 0
      %654 = vmatprep.subr.bf16.mxu0 0
      %655 = vmatpush1.bf16.msra.mxu0 0
      %656 = vmatprep.subr.bf16.mxu0 0
      %657 = vmatpush1.bf16.msra.mxu0 0
      %658 = vmatprep.subr.bf16.mxu0 0
      %659 = vmatpush1.bf16.msra.mxu0 0
      %660 = vmatprep.subr.bf16.mxu0 0
      %661 = vmatpush1.bf16.msra.mxu0 0
      %662 = vmatprep.subr.bf16.mxu0 0
      %663 = vmatpush1.bf16.msra.mxu0 0
      %664 = vmatprep.mubr.bf16.mxu0 0
      %665 = vmatmul.mubr.bf16.gmra.mrb[0].mxu0 %v624
      %v666 = vpop.f32.mrb[0].mxu0
      %v667 = vadd.f32 %v330, %v666
      %v668 = vpop.f32.mrb[0].mxu0
      %v669 = vpop.f32.mrb[0].mxu0
      %v670 = vadd.f32 %v330, %v669
      %v671 = vpop.f32.mrb[0].mxu0
      %672 = vmatprep.mubr.bf16.mxu0 0
      %673 = vmatmul.mubr.bf16.gmra.mrb[0].mxu0 %v625
      %v674 = vpop.f32.mrb[0].mxu0
      %v675 = vadd.f32 %v330, %v674
      %v676 = vpop.f32.mrb[0].mxu0
      %v677 = vpop.f32.mrb[0].mxu0
      %v678 = vadd.f32 %v330, %v677
      %v679 = vpop.f32.mrb[0].mxu0
      %680 = vmatprep.mubr.bf16.mxu0 0
      %681 = vmatmul.mubr.bf16.gmra.mrb[0].mxu0 %v626
      %v682 = vpop.f32.mrb[0].mxu0
      %v683 = vadd.f32 %v330, %v682
      %v684 = vpop.f32.mrb[0].mxu0
      %v685 = vpop.f32.mrb[0].mxu0
      %v686 = vadd.f32 %v330, %v685
      %v687 = vpop.f32.mrb[0].mxu0
      %688 = vmatprep.mubr.bf16.mxu0 0
      %689 = vmatmul.mubr.bf16.gmra.mrb[0].mxu0 %v627
      %v690 = vpop.f32.mrb[0].mxu0
      %v691 = vadd.f32 %v330, %v690
      %v692 = vpop.f32.mrb[0].mxu0
      %v693 = vpop.f32.mrb[0].mxu0
      %v694 = vpop.f32.mrb[0].mxu0
      %695 = vdwg.mxu0
      %v696 = vmax.f32 %v667, 0.0
      %v697 = vmax.f32 %v670, 0.0
      %v698 = vmax.f32 %v675, 0.0
      %v699 = vmax.f32 %v678, 0.0
      %v700 = vmax.f32 %v683, 0.0
      %v701 = vmax.f32 %v686, 0.0
      %v702 = vmax.f32 %v691, 0.0
      %v703 = vmin.f32 %v696, 6.0
      %v704 = vmin.f32 %v697, 6.0
      %v705 = vmin.f32 %v698, 6.0
      %v706 = vmin.f32 %v699, 6.0
      %v707 = vmin.f32 %v700, 6.0
      %v708 = vmin.f32 %v701, 6.0
      %v709 = vmin.f32 %v702, 6.0
      %s710 = scalar_lea.vmem %s273, 96
      %v711 = vld [vmem:[%s710] sm:$0xf]
      %v712 = vld [vmem:[%s710 + $0x4] sm:$0xf]
      %v713 = vld [vmem:[%s710 + $0x8] sm:$0xf]
      %v714 = vld [vmem:[%s710 + $0xc] sm:$0xf]
      %v715 = vld [vmem:[%s710 + $0x10] sm:$0xf]
      %v716 = vld [vmem:[%s710 + $0x14] sm:$0xf]
      %v717 = vld [vmem:[%s710 + $0x18] sm:$0xf]
      %v718 = vld [vmem:[%s710 + $0x1c] sm:$0xf]
      %v727 = vunpack.c.l.b16 %v711
      %v728 = vunpack.c.l.b16 %v712
      %v729 = vunpack.c.l.b16 %v713
      %v730 = vunpack.c.l.b16 %v714
      %v731 = vunpack.c.l.b16 %v715
      %v732 = vunpack.c.l.b16 %v716
      %v733 = vunpack.c.l.b16 %v717
      %v734 = vunpack.c.l.b16 %v718
      %v735 = vpack.c.b16 %v728, %v727
      %v736 = vpack.c.b16 %v730, %v729
      %v737 = vpack.c.b16 %v732, %v731
      %v738 = vpack.c.b16 %v734, %v733
      %743 = vmatprep.subr.bf16.mxu0 0
      %744 = vmatpush1.bf16.msra.mxu0 %v388
      %745 = vmatprep.subr.bf16.mxu0 0
      %746 = vmatpush1.bf16.msra.mxu0 %v389
      %747 = vmatprep.subr.bf16.mxu0 0
      %748 = vmatpush1.bf16.msra.mxu0 %v390
      %749 = vmatprep.subr.bf16.mxu0 0
      %750 = vmatpush1.bf16.msra.mxu0 %v391
      %751 = vmatprep.subr.bf16.mxu0 0
      %752 = vmatpush1.bf16.msra.mxu0 %v392
      %753 = vmatprep.subr.bf16.mxu0 0
      %754 = vmatpush1.bf16.msra.mxu0 %v393
      %755 = vmatprep.subr.bf16.mxu0 0
      %756 = vmatpush1.bf16.msra.mxu0 %v394
      %757 = vmatprep.subr.bf16.mxu0 0
      %758 = vmatpush1.bf16.msra.mxu0 %v395
      %759 = vmatprep.subr.bf16.mxu0 0
      %760 = vmatpush1.bf16.msra.mxu0 0
      %761 = vmatprep.subr.bf16.mxu0 0
      %762 = vmatpush1.bf16.msra.mxu0 0
      %763 = vmatprep.subr.bf16.mxu0 0
      %764 = vmatpush1.bf16.msra.mxu0 0
      %765 = vmatprep.subr.bf16.mxu0 0
      %766 = vmatpush1.bf16.msra.mxu0 0
      %767 = vmatprep.subr.bf16.mxu0 0
      %768 = vmatpush1.bf16.msra.mxu0 0
      %769 = vmatprep.subr.bf16.mxu0 0
      %770 = vmatpush1.bf16.msra.mxu0 0
      %771 = vmatprep.subr.bf16.mxu0 0
      %772 = vmatpush1.bf16.msra.mxu0 0
      %773 = vmatprep.subr.bf16.mxu0 0
      %774 = vmatpush1.bf16.msra.mxu0 0
      %775 = vmatprep.mubr.bf16.mxu0 0
      %776 = vmatmul.mubr.bf16.gmra.mrb[0].mxu0 %v735
      %v777 = vpop.f32.mrb[0].mxu0
      %v778 = vadd.f32 %v330, %v777
      %v779 = vpop.f32.mrb[0].mxu0
      %v780 = vpop.f32.mrb[0].mxu0
      %v781 = vadd.f32 %v330, %v780
      %v782 = vpop.f32.mrb[0].mxu0
      %783 = vmatprep.mubr.bf16.mxu0 0
      %784 = vmatmul.mubr.bf16.gmra.mrb[0].mxu0 %v736
      %v785 = vpop.f32.mrb[0].mxu0
      %v786 = vadd.f32 %v330, %v785
      %v787 = vpop.f32.mrb[0].mxu0
      %v788 = vpop.f32.mrb[0].mxu0
      %v789 = vadd.f32 %v330, %v788
      %v790 = vpop.f32.mrb[0].mxu0
      %791 = vmatprep.mubr.bf16.mxu0 0
      %792 = vmatmul.mubr.bf16.gmra.mrb[0].mxu0 %v737
      %v793 = vpop.f32.mrb[0].mxu0
      %v794 = vadd.f32 %v330, %v793
      %v795 = vpop.f32.mrb[0].mxu0
      %v796 = vpop.f32.mrb[0].mxu0
      %v797 = vadd.f32 %v330, %v796
      %v798 = vpop.f32.mrb[0].mxu0
      %799 = vmatprep.mubr.bf16.mxu0 0
      %800 = vmatmul.mubr.bf16.gmra.mrb[0].mxu0 %v738
      %v801 = vpop.f32.mrb[0].mxu0
      %v802 = vadd.f32 %v330, %v801
      %v803 = vpop.f32.mrb[0].mxu0
      %v804 = vpop.f32.mrb[0].mxu0
      %v805 = vpop.f32.mrb[0].mxu0
      %806 = vdwg.mxu0
      %v807 = vmax.f32 %v778, 0.0
      %v808 = vmax.f32 %v781, 0.0
      %v809 = vmax.f32 %v786, 0.0
      %v810 = vmax.f32 %v789, 0.0
      %v811 = vmax.f32 %v794, 0.0
      %v812 = vmax.f32 %v797, 0.0
      %v813 = vmax.f32 %v802, 0.0
      %v814 = vmin.f32 %v807, 6.0
      %v815 = vmin.f32 %v808, 6.0
      %v816 = vmin.f32 %v809, 6.0
      %v817 = vmin.f32 %v810, 6.0
      %v818 = vmin.f32 %v811, 6.0
      %v819 = vmin.f32 %v812, 6.0
      %v820 = vmin.f32 %v813, 6.0
      %v821 = vlaneseq
      %v822 = vshrl.u32 %v821, 7
      %v823 = vsub.s32 0, %v822
      %v824 = vrot.slane %v297, %v823
      %v825 = vmul.f32 %v477, %v824
      %v826 = vadd.f32 %v825, 0.0
      %v827 = vlaneseq
      %v828 = vshrl.u32 %v827, 7
      %v829 = vsub.s32 1, %v828
      %v830 = vrot.slane %v297, %v829
      %v831 = vmul.f32 %v591, %v830
      %v832 = vadd.f32 %v826, %v831
      %v833 = vlaneseq
      %v834 = vshrl.u32 %v833, 7
      %v835 = vsub.s32 2, %v834
      %v836 = vrot.slane %v297, %v835
      %v837 = vmul.f32 %v477, %v836
      %v839 = vrot.slane %v837, 1
      %v841 = vadd.f32 %v832, %v839
      %v842 = vlaneseq
      %v843 = vshrl.u32 %v842, 7
      %v844 = vsub.s32 0, %v843
      %v845 = vrot.slane %v298, %v844
      %v846 = vmul.f32 %v703, %v845
      %v847 = vadd.f32 %v841, %v846
      %v848 = vlaneseq
      %v849 = vshrl.u32 %v848, 7
      %v850 = vsub.s32 1, %v849
      %v851 = vrot.slane %v298, %v850
      %v852 = vmul.f32 %v814, %v851
      %v853 = vadd.f32 %v847, %v852
      %v854 = vlaneseq
      %v855 = vshrl.u32 %v854, 7
      %v856 = vsub.s32 2, %v855
      %v857 = vrot.slane %v298, %v856
      %v858 = vmul.f32 %v703, %v857
      %v860 = vrot.slane %v858, 1
      %v862 = vadd.f32 %v853, %v860
      %v863 = vlaneseq
      %v864 = vshrl.u32 %v863, 7
      %v865 = vsub.s32 0, %v864
      %v866 = vrot.slane %v299, %v865
      %v867 = vmul.f32 %v478, %v866
      %v868 = vadd.f32 %v862, %v867
      %v869 = vlaneseq
      %v870 = vshrl.u32 %v869, 7
      %v871 = vsub.s32 1, %v870
      %v872 = vrot.slane %v299, %v871
      %v873 = vmul.f32 %v592, %v872
      %v874 = vadd.f32 %v868, %v873
      %v875 = vlaneseq
      %v876 = vshrl.u32 %v875, 7
      %v877 = vsub.s32 2, %v876
      %v878 = vrot.slane %v299, %v877
      %v879 = vmul.f32 %v478, %v878
      %v881 = vrot.slane %v879, 1
      %v883 = vadd.f32 %v874, %v881
      %v885 = vlaneseq
      %v886 = vshrl.u32 %v885, 7
      %v887 = vsub.s32 0, %v886
      %v888 = vrot.slane %v300, %v887
      %v890 = vadd.f32 %v883, %v888
      %v891 = vmax.f32 %v890, 0.0
      %v892 = vmin.f32 %v891, 6.0
      %v893 = vpack.c.bf16 %v892, %v892
      %v895 = vlaneseq
      %v896 = vshrl.u32 %v895, 7
      %v897 = vsub.s32 0, %v896
      %v898 = vrot.slane %v317, %v897
      %v916 = vunpack.c.l.b16 %v301
      %v917 = vunpack.c.l.b16 %v302
      %v918 = vunpack.c.l.b16 %v303
      %v919 = vunpack.c.l.b16 %v304
      %v920 = vunpack.c.l.b16 %v305
      %v921 = vunpack.c.l.b16 %v306
      %v922 = vunpack.c.l.b16 %v307
      %v923 = vunpack.c.l.b16 %v308
      %v924 = vunpack.c.l.b16 %v309
      %v925 = vunpack.c.l.b16 %v310
      %v926 = vunpack.c.l.b16 %v311
      %v927 = vunpack.c.l.b16 %v312
      %v928 = vunpack.c.l.b16 %v313
      %v929 = vunpack.c.l.b16 %v314
      %v930 = vunpack.c.l.b16 %v315
      %v931 = vunpack.c.l.b16 %v316
      %v932 = vpack.c.b16 %v917, %v916
      %v933 = vpack.c.b16 %v919, %v918
      %v934 = vpack.c.b16 %v921, %v920
      %v935 = vpack.c.b16 %v923, %v922
      %v936 = vpack.c.b16 %v925, %v924
      %v937 = vpack.c.b16 %v927, %v926
      %v938 = vpack.c.b16 %v929, %v928
      %v939 = vpack.c.b16 %v931, %v930
      %948 = vmatprep.subr.bf16.mxu0 0
      %949 = vmatpush1.bf16.msra.mxu0 %v932
      %950 = vmatprep.subr.bf16.mxu0 0
      %951 = vmatpush1.bf16.msra.mxu0 %v933
      %952 = vmatprep.subr.bf16.mxu0 0
      %953 = vmatpush1.bf16.msra.mxu0 %v934
      %954 = vmatprep.subr.bf16.mxu0 0
      %955 = vmatpush1.bf16.msra.mxu0 %v935
      %956 = vmatprep.subr.bf16.mxu0 0
      %957 = vmatpush1.bf16.msra.mxu0 %v936
      %958 = vmatprep.subr.bf16.mxu0 0
      %959 = vmatpush1.bf16.msra.mxu0 %v937
      %960 = vmatprep.subr.bf16.mxu0 0
      %961 = vmatpush1.bf16.msra.mxu0 %v938
      %962 = vmatprep.subr.bf16.mxu0 0
      %963 = vmatpush1.bf16.msra.mxu0 %v939
      %964 = vmatprep.subr.bf16.mxu0 0
      %965 = vmatpush1.bf16.msra.mxu0 0
      %966 = vmatprep.subr.bf16.mxu0 0
      %967 = vmatpush1.bf16.msra.mxu0 0
      %968 = vmatprep.subr.bf16.mxu0 0
      %969 = vmatpush1.bf16.msra.mxu0 0
      %970 = vmatprep.subr.bf16.mxu0 0
      %971 = vmatpush1.bf16.msra.mxu0 0
      %972 = vmatprep.subr.bf16.mxu0 0
      %973 = vmatpush1.bf16.msra.mxu0 0
      %974 = vmatprep.subr.bf16.mxu0 0
      %975 = vmatpush1.bf16.msra.mxu0 0
      %976 = vmatprep.subr.bf16.mxu0 0
      %977 = vmatpush1.bf16.msra.mxu0 0
      %978 = vmatprep.subr.bf16.mxu0 0
      %979 = vmatpush1.bf16.msra.mxu0 0
      %980 = vmatprep.mubr.bf16.mxu0 0
      %981 = vmatmul.mubr.bf16.gmra.mrb[0].mxu0 %v893
      %v982 = vpop.f32.mrb[0].mxu0
      %v983 = vadd.f32 %v898, %v982
      %v984 = vpop.f32.mrb[0].mxu0
      %v985 = vpop.f32.mrb[0].mxu0
      %v986 = vpop.f32.mrb[0].mxu0
      %987 = vdwg.mxu0
      %988 = vst [vmem:[%s278] sm:$0x7f] %v983
      %v989 = vmul.f32 %v478, %v824
      %v990 = vadd.f32 %v989, 0.0
      %v991 = vmul.f32 %v592, %v830
      %v992 = vadd.f32 %v990, %v991
      %v993 = vmul.f32 %v478, %v836
      %v995 = vrot.slane %v993, 1
      %v997 = vadd.f32 %v992, %v995
      %v998 = vmul.f32 %v704, %v845
      %v999 = vadd.f32 %v997, %v998
      %v1000 = vmul.f32 %v815, %v851
      %v1001 = vadd.f32 %v999, %v1000
      %v1002 = vmul.f32 %v704, %v857
      %v1004 = vrot.slane %v1002, 1
      %v1006 = vadd.f32 %v1001, %v1004
      %v1007 = vmul.f32 %v479, %v866
      %v1008 = vadd.f32 %v1006, %v1007
      %v1009 = vmul.f32 %v593, %v872
      %v1010 = vadd.f32 %v1008, %v1009
      %v1011 = vmul.f32 %v479, %v878
      %v1013 = vrot.slane %v1011, 1
      %v1015 = vadd.f32 %v1010, %v1013
      %v1016 = vadd.f32 %v1015, %v888
      %v1017 = vmax.f32 %v1016, 0.0
      %v1018 = vmin.f32 %v1017, 6.0
      %v1019 = vpack.c.bf16 %v1018, %v1018
      %1020 = vmatprep.subr.bf16.mxu0 0
      %1021 = vmatpush1.bf16.msra.mxu0 %v932
      %1022 = vmatprep.subr.bf16.mxu0 0
      %1023 = vmatpush1.bf16.msra.mxu0 %v933
      %1024 = vmatprep.subr.bf16.mxu0 0
      %1025 = vmatpush1.bf16.msra.mxu0 %v934
      %1026 = vmatprep.subr.bf16.mxu0 0
      %1027 = vmatpush1.bf16.msra.mxu0 %v935
      %1028 = vmatprep.subr.bf16.mxu0 0
      %1029 = vmatpush1.bf16.msra.mxu0 %v936
      %1030 = vmatprep.subr.bf16.mxu0 0
      %1031 = vmatpush1.bf16.msra.mxu0 %v937
      %1032 = vmatprep.subr.bf16.mxu0 0
      %1033 = vmatpush1.bf16.msra.mxu0 %v938
      %1034 = vmatprep.subr.bf16.mxu0 0
      %1035 = vmatpush1.bf16.msra.mxu0 %v939
      %1036 = vmatprep.subr.bf16.mxu0 0
      %1037 = vmatpush1.bf16.msra.mxu0 0
      %1038 = vmatprep.subr.bf16.mxu0 0
      %1039 = vmatpush1.bf16.msra.mxu0 0
      %1040 = vmatprep.subr.bf16.mxu0 0
      %1041 = vmatpush1.bf16.msra.mxu0 0
      %1042 = vmatprep.subr.bf16.mxu0 0
      %1043 = vmatpush1.bf16.msra.mxu0 0
      %1044 = vmatprep.subr.bf16.mxu0 0
      %1045 = vmatpush1.bf16.msra.mxu0 0
      %1046 = vmatprep.subr.bf16.mxu0 0
      %1047 = vmatpush1.bf16.msra.mxu0 0
      %1048 = vmatprep.subr.bf16.mxu0 0
      %1049 = vmatpush1.bf16.msra.mxu0 0
      %1050 = vmatprep.subr.bf16.mxu0 0
      %1051 = vmatpush1.bf16.msra.mxu0 0
      %1052 = vmatprep.mubr.bf16.mxu0 0
      %1053 = vmatmul.mubr.bf16.gmra.mrb[0].mxu0 %v1019
      %v1054 = vpop.f32.mrb[0].mxu0
      %v1055 = vadd.f32 %v898, %v1054
      %v1056 = vpop.f32.mrb[0].mxu0
      %v1057 = vpop.f32.mrb[0].mxu0
      %v1058 = vpop.f32.mrb[0].mxu0
      %1059 = vdwg.mxu0
      %s1060 = scalar_lea.vmem %s278, 8
      %1061 = vst [vmem:[%s1060] sm:$0x7f] %v1055
      %v1062 = vmul.f32 %v479, %v824
      %v1063 = vadd.f32 %v1062, 0.0
      %v1064 = vmul.f32 %v593, %v830
      %v1065 = vadd.f32 %v1063, %v1064
      %v1066 = vmul.f32 %v479, %v836
      %v1068 = vrot.slane %v1066, 1
      %v1070 = vadd.f32 %v1065, %v1068
      %v1071 = vmul.f32 %v705, %v845
      %v1072 = vadd.f32 %v1070, %v1071
      %v1073 = vmul.f32 %v816, %v851
      %v1074 = vadd.f32 %v1072, %v1073
      %v1075 = vmul.f32 %v705, %v857
      %v1077 = vrot.slane %v1075, 1
      %v1079 = vadd.f32 %v1074, %v1077
      %v1080 = vmul.f32 %v480, %v866
      %v1081 = vadd.f32 %v1079, %v1080
      %v1082 = vmul.f32 %v594, %v872
      %v1083 = vadd.f32 %v1081, %v1082
      %v1084 = vmul.f32 %v480, %v878
      %v1086 = vrot.slane %v1084, 1
      %v1088 = vadd.f32 %v1083, %v1086
      %v1089 = vadd.f32 %v1088, %v888
      %v1090 = vmax.f32 %v1089, 0.0
      %v1091 = vmin.f32 %v1090, 6.0
      %v1092 = vpack.c.bf16 %v1091, %v1091
      %1093 = vmatprep.subr.bf16.mxu0 0
      %1094 = vmatpush1.bf16.msra.mxu0 %v932
      %1095 = vmatprep.subr.bf16.mxu0 0
      %1096 = vmatpush1.bf16.msra.mxu0 %v933
      %1097 = vmatprep.subr.bf16.mxu0 0
      %1098 = vmatpush1.bf16.msra.mxu0 %v934
      %1099 = vmatprep.subr.bf16.mxu0 0
      %1100 = vmatpush1.bf16.msra.mxu0 %v935
      %1101 = vmatprep.subr.bf16.mxu0 0
      %1102 = vmatpush1.bf16.msra.mxu0 %v936
      %1103 = vmatprep.subr.bf16.mxu0 0
      %1104 = vmatpush1.bf16.msra.mxu0 %v937
      %1105 = vmatprep.subr.bf16.mxu0 0
      %1106 = vmatpush1.bf16.msra.mxu0 %v938
      %1107 = vmatprep.subr.bf16.mxu0 0
      %1108 = vmatpush1.bf16.msra.mxu0 %v939
      %1109 = vmatprep.subr.bf16.mxu0 0
      %1110 = vmatpush1.bf16.msra.mxu0 0
      %1111 = vmatprep.subr.bf16.mxu0 0
      %1112 = vmatpush1.bf16.msra.mxu0 0
      %1113 = vmatprep.subr.bf16.mxu0 0
      %1114 = vmatpush1.bf16.msra.mxu0 0
      %1115 = vmatprep.subr.bf16.mxu0 0
      %1116 = vmatpush1.bf16.msra.mxu0 0
      %1117 = vmatprep.subr.bf16.mxu0 0
      %1118 = vmatpush1.bf16.msra.mxu0 0
      %1119 = vmatprep.subr.bf16.mxu0 0
      %1120 = vmatpush1.bf16.msra.mxu0 0
      %1121 = vmatprep.subr.bf16.mxu0 0
      %1122 = vmatpush1.bf16.msra.mxu0 0
      %1123 = vmatprep.subr.bf16.mxu0 0
      %1124 = vmatpush1.bf16.msra.mxu0 0
      %1125 = vmatprep.mubr.bf16.mxu0 0
      %1126 = vmatmul.mubr.bf16.gmra.mrb[0].mxu0 %v1092
      %v1127 = vpop.f32.mrb[0].mxu0
      %v1128 = vadd.f32 %v898, %v1127
      %v1129 = vpop.f32.mrb[0].mxu0
      %v1130 = vpop.f32.mrb[0].mxu0
      %v1131 = vpop.f32.mrb[0].mxu0
      %1132 = vdwg.mxu0
      %s1133 = scalar_lea.vmem %s278, 16
      %1134 = vst [vmem:[%s1133] sm:$0x7f] %v1128
      %v1135 = vmul.f32 %v480, %v824
      %v1136 = vadd.f32 %v1135, 0.0
      %v1137 = vmul.f32 %v594, %v830
      %v1138 = vadd.f32 %v1136, %v1137
      %v1139 = vmul.f32 %v480, %v836
      %v1141 = vrot.slane %v1139, 1
      %v1143 = vadd.f32 %v1138, %v1141
      %v1144 = vmul.f32 %v706, %v845
      %v1145 = vadd.f32 %v1143, %v1144
      %v1146 = vmul.f32 %v817, %v851
      %v1147 = vadd.f32 %v1145, %v1146
      %v1148 = vmul.f32 %v706, %v857
      %v1150 = vrot.slane %v1148, 1
      %v1152 = vadd.f32 %v1147, %v1150
      %v1153 = vmul.f32 %v481, %v866
      %v1154 = vadd.f32 %v1152, %v1153
      %v1155 = vmul.f32 %v595, %v872
      %v1156 = vadd.f32 %v1154, %v1155
      %v1157 = vmul.f32 %v481, %v878
      %v1159 = vrot.slane %v1157, 1
      %v1161 = vadd.f32 %v1156, %v1159
      %v1162 = vadd.f32 %v1161, %v888
      %v1163 = vmax.f32 %v1162, 0.0
      %v1164 = vmin.f32 %v1163, 6.0
      %v1165 = vpack.c.bf16 %v1164, %v1164
      %1166 = vmatprep.subr.bf16.mxu0 0
      %1167 = vmatpush1.bf16.msra.mxu0 %v932
      %1168 = vmatprep.subr.bf16.mxu0 0
      %1169 = vmatpush1.bf16.msra.mxu0 %v933
      %1170 = vmatprep.subr.bf16.mxu0 0
      %1171 = vmatpush1.bf16.msra.mxu0 %v934
      %1172 = vmatprep.subr.bf16.mxu0 0
      %1173 = vmatpush1.bf16.msra.mxu0 %v935
      %1174 = vmatprep.subr.bf16.mxu0 0
      %1175 = vmatpush1.bf16.msra.mxu0 %v936
      %1176 = vmatprep.subr.bf16.mxu0 0
      %1177 = vmatpush1.bf16.msra.mxu0 %v937
      %1178 = vmatprep.subr.bf16.mxu0 0
      %1179 = vmatpush1.bf16.msra.mxu0 %v938
      %1180 = vmatprep.subr.bf16.mxu0 0
      %1181 = vmatpush1.bf16.msra.mxu0 %v939
      %1182 = vmatprep.subr.bf16.mxu0 0
      %1183 = vmatpush1.bf16.msra.mxu0 0
      %1184 = vmatprep.subr.bf16.mxu0 0
      %1185 = vmatpush1.bf16.msra.mxu0 0
      %1186 = vmatprep.subr.bf16.mxu0 0
      %1187 = vmatpush1.bf16.msra.mxu0 0
      %1188 = vmatprep.subr.bf16.mxu0 0
      %1189 = vmatpush1.bf16.msra.mxu0 0
      %1190 = vmatprep.subr.bf16.mxu0 0
      %1191 = vmatpush1.bf16.msra.mxu0 0
      %1192 = vmatprep.subr.bf16.mxu0 0
      %1193 = vmatpush1.bf16.msra.mxu0 0
      %1194 = vmatprep.subr.bf16.mxu0 0
      %1195 = vmatpush1.bf16.msra.mxu0 0
      %1196 = vmatprep.subr.bf16.mxu0 0
      %1197 = vmatpush1.bf16.msra.mxu0 0
      %1198 = vmatprep.mubr.bf16.mxu0 0
      %1199 = vmatmul.mubr.bf16.gmra.mrb[0].mxu0 %v1165
      %v1200 = vpop.f32.mrb[0].mxu0
      %v1201 = vadd.f32 %v898, %v1200
      %v1202 = vpop.f32.mrb[0].mxu0
      %v1203 = vpop.f32.mrb[0].mxu0
      %v1204 = vpop.f32.mrb[0].mxu0
      %1205 = vdwg.mxu0
      %s1206 = scalar_lea.vmem %s278, 24
      %1207 = vst [vmem:[%s1206] sm:$0x7f] %v1201
      %v1208 = vmul.f32 %v481, %v824
      %v1209 = vadd.f32 %v1208, 0.0
      %v1210 = vmul.f32 %v595, %v830
      %v1211 = vadd.f32 %v1209, %v1210
      %v1212 = vmul.f32 %v481, %v836
      %v1214 = vrot.slane %v1212, 1
      %v1216 = vadd.f32 %v1211, %v1214
      %v1217 = vmul.f32 %v707, %v845
      %v1218 = vadd.f32 %v1216, %v1217
      %v1219 = vmul.f32 %v818, %v851
      %v1220 = vadd.f32 %v1218, %v1219
      %v1221 = vmul.f32 %v707, %v857
      %v1223 = vrot.slane %v1221, 1
      %v1225 = vadd.f32 %v1220, %v1223
      %v1226 = vmul.f32 %v482, %v866
      %v1227 = vadd.f32 %v1225, %v1226
      %v1228 = vmul.f32 %v596, %v872
      %v1229 = vadd.f32 %v1227, %v1228
      %v1230 = vmul.f32 %v482, %v878
      %v1232 = vrot.slane %v1230, 1
      %v1234 = vadd.f32 %v1229, %v1232
      %v1235 = vadd.f32 %v1234, %v888
      %v1236 = vmax.f32 %v1235, 0.0
      %v1237 = vmin.f32 %v1236, 6.0
      %v1238 = vpack.c.bf16 %v1237, %v1237
      %1239 = vmatprep.subr.bf16.mxu0 0
      %1240 = vmatpush1.bf16.msra.mxu0 %v932
      %1241 = vmatprep.subr.bf16.mxu0 0
      %1242 = vmatpush1.bf16.msra.mxu0 %v933
      %1243 = vmatprep.subr.bf16.mxu0 0
      %1244 = vmatpush1.bf16.msra.mxu0 %v934
      %1245 = vmatprep.subr.bf16.mxu0 0
      %1246 = vmatpush1.bf16.msra.mxu0 %v935
      %1247 = vmatprep.subr.bf16.mxu0 0
      %1248 = vmatpush1.bf16.msra.mxu0 %v936
      %1249 = vmatprep.subr.bf16.mxu0 0
      %1250 = vmatpush1.bf16.msra.mxu0 %v937
      %1251 = vmatprep.subr.bf16.mxu0 0
      %1252 = vmatpush1.bf16.msra.mxu0 %v938
      %1253 = vmatprep.subr.bf16.mxu0 0
      %1254 = vmatpush1.bf16.msra.mxu0 %v939
      %1255 = vmatprep.subr.bf16.mxu0 0
      %1256 = vmatpush1.bf16.msra.mxu0 0
      %1257 = vmatprep.subr.bf16.mxu0 0
      %1258 = vmatpush1.bf16.msra.mxu0 0
      %1259 = vmatprep.subr.bf16.mxu0 0
      %1260 = vmatpush1.bf16.msra.mxu0 0
      %1261 = vmatprep.subr.bf16.mxu0 0
      %1262 = vmatpush1.bf16.msra.mxu0 0
      %1263 = vmatprep.subr.bf16.mxu0 0
      %1264 = vmatpush1.bf16.msra.mxu0 0
      %1265 = vmatprep.subr.bf16.mxu0 0
      %1266 = vmatpush1.bf16.msra.mxu0 0
      %1267 = vmatprep.subr.bf16.mxu0 0
      %1268 = vmatpush1.bf16.msra.mxu0 0
      %1269 = vmatprep.subr.bf16.mxu0 0
      %1270 = vmatpush1.bf16.msra.mxu0 0
      %1271 = vmatprep.mubr.bf16.mxu0 0
      %1272 = vmatmul.mubr.bf16.gmra.mrb[0].mxu0 %v1238
      %v1273 = vpop.f32.mrb[0].mxu0
      %v1274 = vadd.f32 %v898, %v1273
      %v1275 = vpop.f32.mrb[0].mxu0
      %v1276 = vpop.f32.mrb[0].mxu0
      %v1277 = vpop.f32.mrb[0].mxu0
      %1278 = vdwg.mxu0
      %s1279 = scalar_lea.vmem %s278, 32
      %1280 = vst [vmem:[%s1279] sm:$0x7f] %v1274
      %v1281 = vmul.f32 %v482, %v824
      %v1282 = vadd.f32 %v1281, 0.0
      %v1283 = vmul.f32 %v596, %v830
      %v1284 = vadd.f32 %v1282, %v1283
      %v1285 = vmul.f32 %v482, %v836
      %v1287 = vrot.slane %v1285, 1
      %v1289 = vadd.f32 %v1284, %v1287
      %v1290 = vmul.f32 %v708, %v845
      %v1291 = vadd.f32 %v1289, %v1290
      %v1292 = vmul.f32 %v819, %v851
      %v1293 = vadd.f32 %v1291, %v1292
      %v1294 = vmul.f32 %v708, %v857
      %v1296 = vrot.slane %v1294, 1
      %v1298 = vadd.f32 %v1293, %v1296
      %v1299 = vmul.f32 %v483, %v866
      %v1300 = vadd.f32 %v1298, %v1299
      %v1301 = vmul.f32 %v597, %v872
      %v1302 = vadd.f32 %v1300, %v1301
      %v1303 = vmul.f32 %v483, %v878
      %v1305 = vrot.slane %v1303, 1
      %v1307 = vadd.f32 %v1302, %v1305
      %v1308 = vadd.f32 %v1307, %v888
      %v1309 = vmax.f32 %v1308, 0.0
      %v1310 = vmin.f32 %v1309, 6.0
      %v1311 = vpack.c.bf16 %v1310, %v1310
      %1312 = vmatprep.subr.bf16.mxu0 0
      %1313 = vmatpush1.bf16.msra.mxu0 %v932
      %1314 = vmatprep.subr.bf16.mxu0 0
      %1315 = vmatpush1.bf16.msra.mxu0 %v933
      %1316 = vmatprep.subr.bf16.mxu0 0
      %1317 = vmatpush1.bf16.msra.mxu0 %v934
      %1318 = vmatprep.subr.bf16.mxu0 0
      %1319 = vmatpush1.bf16.msra.mxu0 %v935
      %1320 = vmatprep.subr.bf16.mxu0 0
      %1321 = vmatpush1.bf16.msra.mxu0 %v936
      %1322 = vmatprep.subr.bf16.mxu0 0
      %1323 = vmatpush1.bf16.msra.mxu0 %v937
      %1324 = vmatprep.subr.bf16.mxu0 0
      %1325 = vmatpush1.bf16.msra.mxu0 %v938
      %1326 = vmatprep.subr.bf16.mxu0 0
      %1327 = vmatpush1.bf16.msra.mxu0 %v939
      %1328 = vmatprep.subr.bf16.mxu0 0
      %1329 = vmatpush1.bf16.msra.mxu0 0
      %1330 = vmatprep.subr.bf16.mxu0 0
      %1331 = vmatpush1.bf16.msra.mxu0 0
      %1332 = vmatprep.subr.bf16.mxu0 0
      %1333 = vmatpush1.bf16.msra.mxu0 0
      %1334 = vmatprep.subr.bf16.mxu0 0
      %1335 = vmatpush1.bf16.msra.mxu0 0
      %1336 = vmatprep.subr.bf16.mxu0 0
      %1337 = vmatpush1.bf16.msra.mxu0 0
      %1338 = vmatprep.subr.bf16.mxu0 0
      %1339 = vmatpush1.bf16.msra.mxu0 0
      %1340 = vmatprep.subr.bf16.mxu0 0
      %1341 = vmatpush1.bf16.msra.mxu0 0
      %1342 = vmatprep.subr.bf16.mxu0 0
      %1343 = vmatpush1.bf16.msra.mxu0 0
      %1344 = vmatprep.mubr.bf16.mxu0 0
      %1345 = vmatmul.mubr.bf16.gmra.mrb[0].mxu0 %v1311
      %v1346 = vpop.f32.mrb[0].mxu0
      %v1347 = vadd.f32 %v898, %v1346
      %v1348 = vpop.f32.mrb[0].mxu0
      %v1349 = vpop.f32.mrb[0].mxu0
      %v1350 = vpop.f32.mrb[0].mxu0
      %1351 = vdwg.mxu0
      %s1352 = scalar_lea.vmem %s278, 40
      %1353 = vst [vmem:[%s1352] sm:$0x7f] %v1347
      %v1354 = vmul.f32 %v483, %v824
      %v1355 = vadd.f32 %v1354, 0.0
      %v1356 = vmul.f32 %v597, %v830
      %v1357 = vadd.f32 %v1355, %v1356
      %v1358 = vmul.f32 %v483, %v836
      %v1360 = vrot.slane %v1358, 1
      %v1362 = vadd.f32 %v1357, %v1360
      %v1363 = vmul.f32 %v709, %v845
      %v1364 = vadd.f32 %v1362, %v1363
      %v1365 = vmul.f32 %v820, %v851
      %v1366 = vadd.f32 %v1364, %v1365
      %v1367 = vmul.f32 %v709, %v857
      %v1369 = vrot.slane %v1367, 1
      %v1371 = vadd.f32 %v1366, %v1369
      %v1372 = vmul.f32 %v484, %v866
      %v1373 = vadd.f32 %v1371, %v1372
      %v1374 = vmul.f32 %v598, %v872
      %v1375 = vadd.f32 %v1373, %v1374
      %v1376 = vmul.f32 %v484, %v878
      %v1378 = vrot.slane %v1376, 1
      %v1380 = vadd.f32 %v1375, %v1378
      %v1381 = vadd.f32 %v1380, %v888
      %v1382 = vmax.f32 %v1381, 0.0
      %v1383 = vmin.f32 %v1382, 6.0
      %v1384 = vpack.c.bf16 %v1383, %v1383
      %1385 = vmatprep.subr.bf16.mxu0 0
      %1386 = vmatpush1.bf16.msra.mxu0 %v932
      %1387 = vmatprep.subr.bf16.mxu0 0
      %1388 = vmatpush1.bf16.msra.mxu0 %v933
      %1389 = vmatprep.subr.bf16.mxu0 0
      %1390 = vmatpush1.bf16.msra.mxu0 %v934
      %1391 = vmatprep.subr.bf16.mxu0 0
      %1392 = vmatpush1.bf16.msra.mxu0 %v935
      %1393 = vmatprep.subr.bf16.mxu0 0
      %1394 = vmatpush1.bf16.msra.mxu0 %v936
      %1395 = vmatprep.subr.bf16.mxu0 0
      %1396 = vmatpush1.bf16.msra.mxu0 %v937
      %1397 = vmatprep.subr.bf16.mxu0 0
      %1398 = vmatpush1.bf16.msra.mxu0 %v938
      %1399 = vmatprep.subr.bf16.mxu0 0
      %1400 = vmatpush1.bf16.msra.mxu0 %v939
      %1401 = vmatprep.subr.bf16.mxu0 0
      %1402 = vmatpush1.bf16.msra.mxu0 0
      %1403 = vmatprep.subr.bf16.mxu0 0
      %1404 = vmatpush1.bf16.msra.mxu0 0
      %1405 = vmatprep.subr.bf16.mxu0 0
      %1406 = vmatpush1.bf16.msra.mxu0 0
      %1407 = vmatprep.subr.bf16.mxu0 0
      %1408 = vmatpush1.bf16.msra.mxu0 0
      %1409 = vmatprep.subr.bf16.mxu0 0
      %1410 = vmatpush1.bf16.msra.mxu0 0
      %1411 = vmatprep.subr.bf16.mxu0 0
      %1412 = vmatpush1.bf16.msra.mxu0 0
      %1413 = vmatprep.subr.bf16.mxu0 0
      %1414 = vmatpush1.bf16.msra.mxu0 0
      %1415 = vmatprep.subr.bf16.mxu0 0
      %1416 = vmatpush1.bf16.msra.mxu0 0
      %1417 = vmatprep.mubr.bf16.mxu0 0
      %1418 = vmatmul.mubr.bf16.gmra.mrb[0].mxu0 %v1384
      %v1419 = vpop.f32.mrb[0].mxu0
      %v1420 = vadd.f32 %v898, %v1419
      %v1421 = vpop.f32.mrb[0].mxu0
      %v1422 = vpop.f32.mrb[0].mxu0
      %v1423 = vpop.f32.mrb[0].mxu0
      %1424 = vdwg.mxu0
      %s1425 = scalar_lea.vmem %s278, 48
      %1426 = vst [vmem:[%s1425] sm:$0x7f] %v1420
      %p1427 = scmp.lt.s32.totalorder %s18, 1
      %s1428 = scalar_select %p1427, %s18, 1
      %s1429 = smul.addr %s1428, 7
      %s1430 = smul.addr %s1429, 8
      %s1431 = scalar_lea.vmem %s7, %s1430
      // Predicated region
      $region49: #{a_call__.1} parent=47 // pred_check
        %p1432 = pneg %p188
      $region50: #{a_call__.1} parent=47 // pred_check_branch
        %1434 = sbr.rel (%p1432) target = $region52
      $region51: #{a_call__.1} parent=47 // pred_region
        _
      $region52: #{a_call__.1} parent=47 // pred_fallthru
        _
    $region48: #{a_call__.1} parent=5 // pred_fallthru
      _
    %p1435 = scmp.le.s32.totalorder 2, %s13
    // Predicated region
    $region53: #{a_call__.1} parent=5 // pred_check
      %p1436 = pneg %p1435
    $region54: #{a_call__.1} parent=5 // pred_check_branch
      %1438 = sbr.rel (%p1436) target = $region56
    $region55: #{a_call__.1} parent=5 // pred_region
      %s1439 = ssub.s32 %s13, 2
      // Predicated region
      $region57: #{a_call__.1} parent=55 // pred_check
        %p1440 = pneg %p194
      $region58: #{a_call__.1} parent=55 // pred_check_branch
        %1442 = sbr.rel (%p1440) target = $region60
      $region59: #{a_call__.1} parent=55 // pred_region
        %p1443 = scmp.lt.s32.totalorder %s19, 1
        %s1444 = scalar_select %p1443, %s19, 1
        %s1445 = smul.addr %s1444, 7
        %s1446 = smul.addr %s1445, 8
        %s1447 = scalar_lea.vmem %s7, %s1446
      $region60: #{a_call__.1} parent=55 // pred_fallthru
        _
    $region56: #{a_call__.1} parent=5 // pred_fallthru
      _
  $region6: #{a_call__.1} parent=0 // loop_footer
    %s17 = sadd.s32 1, %s13
  $region7: #{a_call__.1} parent=0 // loop_footer_branch
    %12 = sbr.rel target = $region3
  $region8: #{a_call__.1} parent=0 // loop_exit
    _

</llo_original>
